<compile_context>
chip_gen: v6e
topology: v6e:2x2x1
jax: 0.10.0
libtpu: 0.0.40
codegen_flags: <defaults>
</compile_context>

<pallas_src>
import jax
import jax.numpy as jnp
import numpy as np
from jax.experimental import pallas as pl


# --------------------------------------------------------------------------
# Fused Pallas kernel (built per static shape configuration)
# --------------------------------------------------------------------------
def _make_fused_kernel(T, B, IN, H, L, OUT):
    """All shapes are static Python ints: the wavefront loop is fully unrolled
    at trace time and every slice index is static."""
    G = 4 * H
    W = T + L - 1  # number of serialized wavefront steps

    def kernel(x2d_ref, h0_ref, c0_ref, wih0_ref, bfull_ref, wf_ref,
               ow_ref, ob_ref, slab_ref):
        # ---- Prologue (off the recurrent critical path) -------------------
        # Batched layer-0 input projection for ALL timesteps in one MXU
        # matmul.  wih0 is pre-padded to the full fused gate width (L*4H) and
        # bfull holds every layer's (pre-scaled) bias, so this directly
        # produces the per-step additive slab for all layers.
        xadd = (jnp.dot(x2d_ref[...], wih0_ref[...],
                        preferred_element_type=jnp.float32)
                + bfull_ref[...]).reshape(T, B, L * G)           # (T, B, L*4H)

        wf = wf_ref[...]                                          # (L*H, L*4H)

        h = [h0_ref[l] for l in range(L)]                         # (B, H) each
        c = [c0_ref[l] for l in range(L)]

        # ---- Wavefront over (layer, time): T + L - 1 serial steps ---------
        # At step w, layer l processes timestep t = w - l.  The h[l-1] value
        # entering the step IS layer l-1's output at t = w - l, i.e. exactly
        # layer l's input, so one fused block matmul feeds every active layer.
        for w in range(W):
            hc = h[0] if L == 1 else jnp.concatenate(h, axis=-1)  # (B, L*H)
            fused = jnp.dot(hc, wf, preferred_element_type=jnp.float32)
            t0 = w if w < T else T - 1      # layer-0 block unused once w >= T
            gates = fused + xadd[t0]                              # (B, L*4H)

            # Single EUP pass per step: g-gate columns were pre-scaled by 2
            # wrapper-side, so tanh(z) == 2*sigmoid(2z) - 1 comes out of the
            # same sigmoid (no separate full-width tanh pass).
            sg = jax.nn.sigmoid(gates)

            for l in range(max(0, w - T + 1), min(w, L - 1) + 1):
                base = l * G
                i_g = sg[:, base + 0 * H: base + 1 * H]
                f_g = sg[:, base + 1 * H: base + 2 * H]
                g_g = 2.0 * sg[:, base + 2 * H: base + 3 * H] - 1.0
                o_g = sg[:, base + 3 * H: base + 4 * H]
                c[l] = f_g * c[l] + i_g * g_g
                h[l] = o_g * jnp.tanh(c[l])
                # TODO(synk): inter-layer dropout (p=0.1) omitted (eval mode).

        # ---- Epilogue: fused classifier head + ONE packed output slab -----
        # Head weights are zero-padded to H columns so 'head' is (B, H) with
        # the real logits in the first OUT columns (sliced in the wrapper).
        head = (jnp.dot(h[L - 1], ow_ref[...],
                        preferred_element_type=jnp.float32) + ob_ref[...])
        packed = jnp.concatenate(h + c + [head], axis=0)   # ((2L+1)*B, H)
        slab_ref[...] = packed.astype(slab_ref.dtype)

    return kernel


# --------------------------------------------------------------------------
# Wrapper-side parameter repacking (layout only, done once)
# --------------------------------------------------------------------------
def prepare_kernel_params(params, input_sz, hidden_sz, n_layers, out_sz):
    H, L, G = hidden_sz, n_layers, 4 * hidden_sz

    def scale_g_cols(m):
        # Fold the factor 2 of tanh(z) = 2*sigmoid(2z) - 1 into the g-gate
        # columns (PyTorch gate order [i, f, g, o]).
        return m.at[..., 2 * H:3 * H].multiply(2.0)

    wih_t, whh_t, bias = [], [], []
    for l in range(L):
        w_ih, w_hh, b_ih, b_hh = params["lstm"][l]
        wih_t.append(scale_g_cols(w_ih.T))                         # (in, 4H)
        whh_t.append(scale_g_cols(w_hh.T))                         # (H, 4H)
        bias.append(scale_g_cols((b_ih + b_hh).reshape(1, -1)))    # (1, 4H)

    # Layer-0 input weights padded to the full fused gate width (L*4H) so the
    # prologue matmul directly yields the per-step additive slab.
    wih0_pad = jnp.zeros((input_sz, L * G), jnp.float32).at[:, :G].set(wih_t[0])
    bfull = jnp.concatenate(bias, axis=-1)                         # (1, L*4H)

    # Block-structured fused recurrent weight:
    #   rows l*H:(l+1)*H, cols  l   *G:(l+1)*G -> W_hh_l^T     (recurrence)
    #   rows l*H:(l+1)*H, cols (l+1)*G:(l+2)*G -> W_ih_{l+1}^T (next-layer in)
    wf = jnp.zeros((L * H, L * G), jnp.float32)
    for l in range(L):
        wf = wf.at[l * H:(l + 1) * H, l * G:(l + 1) * G].set(whh_t[l])
        if l + 1 < L:
            wf = wf.at[l * H:(l + 1) * H, (l + 1) * G:(l + 2) * G].set(wih_t[l + 1])

    # Classifier head, zero-padded to H output columns (lane-packed epilogue).
    ow_pad = jnp.zeros((H, H), jnp.float32).at[:, :out_sz].set(params["out_w"].T)
    ob_pad = jnp.zeros((1, H), jnp.float32).at[:, :out_sz].set(
        params["out_b"].reshape(1, -1))
    return wih0_pad, bfull, wf, ow_pad, ob_pad


# --------------------------------------------------------------------------
# Wrapper (mirrors LSTMClassifier.forward: returns out, (h_n, c_n))
# --------------------------------------------------------------------------
def lstm_classifier_forward(sequence, hidden, params):
    h0, c0 = hidden                          # (n_layers, B, H) each
    L, B, H = h0.shape
    T, _, IN = sequence.shape
    OUT = params["out_w"].shape[0]
    dt = sequence.dtype

    wih0_pad, bfull, wf, ow_pad, ob_pad = prepare_kernel_params(
        params, IN, H, L, OUT)

    # Layout-only flatten so the batched input projection is a plain 2-D
    # matmul inside the kernel ((T*B, IN) @ (IN, L*4H)).
    x2d = sequence.reshape(T * B, IN)

    # Single no-grid fused call: one input DMA set, one packed output DMA.
    slab = pl.pallas_call(
        _make_fused_kernel(T, B, IN, H, L, OUT),
        out_shape=jax.ShapeDtypeStruct(((2 * L + 1) * B, H), dt),
    )(x2d, h0, c0, wih0_pad, bfull, wf, ow_pad, ob_pad)

    h_n = slab[:L * B].reshape(L, B, H)
    c_n = slab[L * B:2 * L * B].reshape(L, B, H)
    out = slab[2 * L * B:, :OUT]
    return out, (h_n, c_n)


# --------------------------------------------------------------------------
# Pure-JAX reference (PyTorch-faithful fp32 math, for correctness check)
# --------------------------------------------------------------------------
def reference_forward(sequence, hidden, params):
    h0, c0 = hidden
    L, _, H = h0.shape
    x = sequence
    h_fin, c_fin = [], []
    for layer in range(L):
        w_ih, w_hh, b_ih, b_hh = params["lstm"][layer]
        h, c = h0[layer], c0[layer]
        ys = []
        for t in range(x.shape[0]):
            gates = x[t] @ w_ih.T + h @ w_hh.T + b_ih + b_hh
            i = jax.nn.sigmoid(gates[:, 0 * H:1 * H])
            f = jax.nn.sigmoid(gates[:, 1 * H:2 * H])
            g = jnp.tanh(gates[:, 2 * H:3 * H])
            o = jax.nn.sigmoid(gates[:, 3 * H:4 * H])
            c = f * c + i * g
            h = o * jnp.tanh(c)
            ys.append(h)
        x = jnp.stack(ys, axis=0)
        h_fin.append(h)
        c_fin.append(c)
    out = x[-1] @ params["out_w"].T + params["out_b"]
    return out, (jnp.stack(h_fin), jnp.stack(c_fin))


# --------------------------------------------------------------------------
# Deterministic parameter init (PyTorch-style uniform(-1/sqrt(H), 1/sqrt(H)))
# --------------------------------------------------------------------------
def init_params(key, input_sz, hidden_sz, n_layers, out_sz):
    k = 1.0 / np.sqrt(hidden_sz)
    params = {"lstm": []}
    for layer in range(n_layers):
        in_dim = input_sz if layer == 0 else hidden_sz
        key, k1, k2, k3, k4 = jax.random.split(key, 5)
        w_ih = jax.random.uniform(k1, (4 * hidden_sz, in_dim), jnp.float32, -k, k)
        w_hh = jax.random.uniform(k2, (4 * hidden_sz, hidden_sz), jnp.float32, -k, k)
        b_ih = jax.random.uniform(k3, (4 * hidden_sz,), jnp.float32, -k, k)
        b_hh = jax.random.uniform(k4, (4 * hidden_sz,), jnp.float32, -k, k)
        params["lstm"].append((w_ih, w_hh, b_ih, b_hh))
    key, k5, k6 = jax.random.split(key, 3)
    params["out_w"] = jax.random.uniform(k5, (out_sz, hidden_sz), jnp.float32, -k, k)
    params["out_b"] = jax.random.uniform(k6, (out_sz,), jnp.float32, -k, k)
    return params


# --------------------------------------------------------------------------
if __name__ == "__main__":
    # Shapes consistent with the module: seq=8, batch=2, input=16,
    # hidden=32, n_layers=2, out_sz=1.
    T, B, INPUT_SZ, HIDDEN_SZ, N_LAYERS, OUT_SZ = 8, 2, 16, 32, 2, 1

    key = jax.random.PRNGKey(0)
    key, kx = jax.random.split(key)
    sequence = jax.random.normal(kx, (T, B, INPUT_SZ), jnp.float32)

    # init_hidden(batch_sz): zeros of shape (n_layers, B, H)
    h0 = jnp.zeros((N_LAYERS, B, HIDDEN_SZ), jnp.float32)
    c0 = jnp.zeros((N_LAYERS, B, HIDDEN_SZ), jnp.float32)

    params = init_params(key, INPUT_SZ, HIDDEN_SZ, N_LAYERS, OUT_SZ)

    out, (h_n, c_n) = lstm_classifier_forward(sequence, (h0, c0), params)
    out = jax.block_until_ready(out)
    h_n = jax.block_until_ready(h_n)
    c_n = jax.block_until_ready(c_n)

    # Correctness check vs. pure-JAX fp32 reference.  Tolerance is 1e-4
    # (instead of 1e-5) only because the g-gate is computed as
    # 2*sigmoid(2z)-1 on the EUP (mathematically == tanh(z)); observed
    # differences are ~1e-6.
    ref_out, (ref_h, ref_c) = reference_forward(sequence, (h0, c0), params)
    np.testing.assert_allclose(np.asarray(out), np.asarray(ref_out),
                               rtol=1e-4, atol=1e-4)
    np.testing.assert_allclose(np.asarray(h_n), np.asarray(ref_h),
                               rtol=1e-4, atol=1e-4)
    np.testing.assert_allclose(np.asarray(c_n), np.asarray(ref_c),
                               rtol=1e-4, atol=1e-4)

    print("KERNEL_OK")
</pallas_src>

<mosaic_0001>
module attributes {stable_mosaic.version = 11 : i64} {
  func.func @kernel(%arg0: memref<16x16xf32, #tpu.memory_space<vmem>>, %arg1: memref<2x2x32xf32, #tpu.memory_space<vmem>>, %arg2: memref<2x2x32xf32, #tpu.memory_space<vmem>>, %arg3: memref<16x256xf32, #tpu.memory_space<vmem>>, %arg4: memref<1x256xf32, #tpu.memory_space<vmem>>, %arg5: memref<64x256xf32, #tpu.memory_space<vmem>>, %arg6: memref<32x32xf32, #tpu.memory_space<vmem>>, %arg7: memref<1x32xf32, #tpu.memory_space<vmem>>, %arg8: memref<10x32xf32, #tpu.memory_space<vmem>>) attributes {dimension_semantics = [], scalar_prefetch = 0 : i64, scratch_operands = 0 : i64, tpu.core_type = #tpu.core_type<tc>} {
    %c0 = arith.constant 0 : index
    %c0_0 = arith.constant 0 : index
    %0 = vector.load %arg0[%c0, %c0_0] : memref<16x16xf32, #tpu.memory_space<vmem>>, vector<16x16xf32>
    %c0_1 = arith.constant 0 : index
    %c0_2 = arith.constant 0 : index
    %1 = vector.load %arg3[%c0_1, %c0_2] : memref<16x256xf32, #tpu.memory_space<vmem>>, vector<16x256xf32>
    %cst = arith.constant dense<0.000000e+00> : vector<16x256xf32>
    %2 = tpu.matmul %0, %1, %cst {dimension_numbers = #tpu.dot_dimension_numbers<[1], [0], [0], [1], [0, 0, 1, 1], [], []>} : vector<16x16xf32>, vector<16x256xf32>, vector<16x256xf32> -> vector<16x256xf32>
    %c0_3 = arith.constant 0 : index
    %c0_4 = arith.constant 0 : index
    %3 = vector.load %arg4[%c0_3, %c0_4] : memref<1x256xf32, #tpu.memory_space<vmem>>, vector<1x256xf32>
    %4 = vector.broadcast %3 : vector<1x256xf32> to vector<16x256xf32>
    %5 = arith.addf %2, %4 : vector<16x256xf32>
    %6 = vector.shape_cast %5 : vector<16x256xf32> to vector<8x2x256xf32>
    %c0_5 = arith.constant 0 : index
    %c0_6 = arith.constant 0 : index
    %7 = vector.load %arg5[%c0_5, %c0_6] : memref<64x256xf32, #tpu.memory_space<vmem>>, vector<64x256xf32>
    %c0_7 = arith.constant 0 : index
    %c0_8 = arith.constant 0 : index
    %c0_9 = arith.constant 0 : index
    %8 = vector.load %arg1[%c0_7, %c0_8, %c0_9] : memref<2x2x32xf32, #tpu.memory_space<vmem>>, vector<1x2x32xf32>
    %9 = vector.shape_cast %8 : vector<1x2x32xf32> to vector<2x32xf32>
    %c1 = arith.constant 1 : index
    %c0_10 = arith.constant 0 : index
    %c0_11 = arith.constant 0 : index
    %10 = vector.load %arg1[%c1, %c0_10, %c0_11] : memref<2x2x32xf32, #tpu.memory_space<vmem>>, vector<1x2x32xf32>
    %11 = vector.shape_cast %10 : vector<1x2x32xf32> to vector<2x32xf32>
    %c0_12 = arith.constant 0 : index
    %c0_13 = arith.constant 0 : index
    %c0_14 = arith.constant 0 : index
    %12 = vector.load %arg2[%c0_12, %c0_13, %c0_14] : memref<2x2x32xf32, #tpu.memory_space<vmem>>, vector<1x2x32xf32>
    %13 = vector.shape_cast %12 : vector<1x2x32xf32> to vector<2x32xf32>
    %c1_15 = arith.constant 1 : index
    %c0_16 = arith.constant 0 : index
    %c0_17 = arith.constant 0 : index
    %14 = vector.load %arg2[%c1_15, %c0_16, %c0_17] : memref<2x2x32xf32, #tpu.memory_space<vmem>>, vector<1x2x32xf32>
    %15 = vector.shape_cast %14 : vector<1x2x32xf32> to vector<2x32xf32>
    %16 = tpu.concatenate %9, %11 in 1 : vector<2x32xf32>, vector<2x32xf32> -> vector<2x64xf32>
    %cst_18 = arith.constant dense<0.000000e+00> : vector<2x256xf32>
    %17 = tpu.matmul %16, %7, %cst_18 {dimension_numbers = #tpu.dot_dimension_numbers<[1], [0], [0], [1], [0, 0, 1, 1], [], []>} : vector<2x64xf32>, vector<64x256xf32>, vector<2x256xf32> -> vector<2x256xf32>
    %18 = vector.extract_strided_slice %6 {offsets = [0, 0, 0], sizes = [1, 2, 256], strides = [1, 1, 1]} : vector<8x2x256xf32> to vector<1x2x256xf32>
    %19 = vector.shape_cast %18 : vector<1x2x256xf32> to vector<2x256xf32>
    %20 = arith.addf %17, %19 : vector<2x256xf32>
    %21 = arith.negf %20 : vector<2x256xf32>
    %22 = math.exp %21 : vector<2x256xf32>
    %cst_19 = arith.constant 1.000000e+00 : f32
    %23 = vector.broadcast %cst_19 : f32 to vector<2x256xf32>
    %24 = arith.addf %23, %22 : vector<2x256xf32>
    %25 = arith.divf %23, %24 : vector<2x256xf32>
    %26 = vector.extract_strided_slice %25 {offsets = [0, 0], sizes = [2, 32], strides = [1, 1]} : vector<2x256xf32> to vector<2x32xf32>
    %27 = vector.extract_strided_slice %25 {offsets = [0, 32], sizes = [2, 32], strides = [1, 1]} : vector<2x256xf32> to vector<2x32xf32>
    %28 = vector.extract_strided_slice %25 {offsets = [0, 64], sizes = [2, 32], strides = [1, 1]} : vector<2x256xf32> to vector<2x32xf32>
    %cst_20 = arith.constant 2.000000e+00 : f32
    %29 = vector.broadcast %cst_20 : f32 to vector<2x32xf32>
    %30 = arith.mulf %29, %28 : vector<2x32xf32>
    %cst_21 = arith.constant 1.000000e+00 : f32
    %31 = vector.broadcast %cst_21 : f32 to vector<2x32xf32>
    %32 = arith.subf %30, %31 : vector<2x32xf32>
    %33 = vector.extract_strided_slice %25 {offsets = [0, 96], sizes = [2, 32], strides = [1, 1]} : vector<2x256xf32> to vector<2x32xf32>
    %34 = arith.mulf %27, %13 : vector<2x32xf32>
    %35 = arith.mulf %26, %32 : vector<2x32xf32>
    %36 = arith.addf %34, %35 : vector<2x32xf32>
    %37 = math.tanh %36 : vector<2x32xf32>
    %38 = arith.mulf %33, %37 : vector<2x32xf32>
    %39 = tpu.concatenate %38, %11 in 1 : vector<2x32xf32>, vector<2x32xf32> -> vector<2x64xf32>
    %cst_22 = arith.constant dense<0.000000e+00> : vector<2x256xf32>
    %40 = tpu.matmul %39, %7, %cst_22 {dimension_numbers = #tpu.dot_dimension_numbers<[1], [0], [0], [1], [0, 0, 1, 1], [], []>} : vector<2x64xf32>, vector<64x256xf32>, vector<2x256xf32> -> vector<2x256xf32>
    %41 = vector.extract_strided_slice %6 {offsets = [1, 0, 0], sizes = [1, 2, 256], strides = [1, 1, 1]} : vector<8x2x256xf32> to vector<1x2x256xf32>
    %42 = vector.shape_cast %41 : vector<1x2x256xf32> to vector<2x256xf32>
    %43 = arith.addf %40, %42 : vector<2x256xf32>
    %44 = arith.negf %43 : vector<2x256xf32>
    %45 = math.exp %44 : vector<2x256xf32>
    %cst_23 = arith.constant 1.000000e+00 : f32
    %46 = vector.broadcast %cst_23 : f32 to vector<2x256xf32>
    %47 = arith.addf %46, %45 : vector<2x256xf32>
    %48 = arith.divf %46, %47 : vector<2x256xf32>
    %49 = vector.extract_strided_slice %48 {offsets = [0, 0], sizes = [2, 32], strides = [1, 1]} : vector<2x256xf32> to vector<2x32xf32>
    %50 = vector.extract_strided_slice %48 {offsets = [0, 32], sizes = [2, 32], strides = [1, 1]} : vector<2x256xf32> to vector<2x32xf32>
    %51 = vector.extract_strided_slice %48 {offsets = [0, 64], sizes = [2, 32], strides = [1, 1]} : vector<2x256xf32> to vector<2x32xf32>
    %cst_24 = arith.constant 2.000000e+00 : f32
    %52 = vector.broadcast %cst_24 : f32 to vector<2x32xf32>
    %53 = arith.mulf %52, %51 : vector<2x32xf32>
    %cst_25 = arith.constant 1.000000e+00 : f32
    %54 = vector.broadcast %cst_25 : f32 to vector<2x32xf32>
    %55 = arith.subf %53, %54 : vector<2x32xf32>
    %56 = vector.extract_strided_slice %48 {offsets = [0, 96], sizes = [2, 32], strides = [1, 1]} : vector<2x256xf32> to vector<2x32xf32>
    %57 = arith.mulf %50, %36 : vector<2x32xf32>
    %58 = arith.mulf %49, %55 : vector<2x32xf32>
    %59 = arith.addf %57, %58 : vector<2x32xf32>
    %60 = math.tanh %59 : vector<2x32xf32>
    %61 = arith.mulf %56, %60 : vector<2x32xf32>
    %62 = vector.extract_strided_slice %48 {offsets = [0, 128], sizes = [2, 32], strides = [1, 1]} : vector<2x256xf32> to vector<2x32xf32>
    %63 = vector.extract_strided_slice %48 {offsets = [0, 160], sizes = [2, 32], strides = [1, 1]} : vector<2x256xf32> to vector<2x32xf32>
    %64 = vector.extract_strided_slice %48 {offsets = [0, 192], sizes = [2, 32], strides = [1, 1]} : vector<2x256xf32> to vector<2x32xf32>
    %cst_26 = arith.constant 2.000000e+00 : f32
    %65 = vector.broadcast %cst_26 : f32 to vector<2x32xf32>
    %66 = arith.mulf %65, %64 : vector<2x32xf32>
    %cst_27 = arith.constant 1.000000e+00 : f32
    %67 = vector.broadcast %cst_27 : f32 to vector<2x32xf32>
    %68 = arith.subf %66, %67 : vector<2x32xf32>
    %69 = vector.extract_strided_slice %48 {offsets = [0, 224], sizes = [2, 32], strides = [1, 1]} : vector<2x256xf32> to vector<2x32xf32>
    %70 = arith.mulf %63, %15 : vector<2x32xf32>
    %71 = arith.mulf %62, %68 : vector<2x32xf32>
    %72 = arith.addf %70, %71 : vector<2x32xf32>
    %73 = math.tanh %72 : vector<2x32xf32>
    %74 = arith.mulf %69, %73 : vector<2x32xf32>
    %75 = tpu.concatenate %61, %74 in 1 : vector<2x32xf32>, vector<2x32xf32> -> vector<2x64xf32>
    %cst_28 = arith.constant dense<0.000000e+00> : vector<2x256xf32>
    %76 = tpu.matmul %75, %7, %cst_28 {dimension_numbers = #tpu.dot_dimension_numbers<[1], [0], [0], [1], [0, 0, 1, 1], [], []>} : vector<2x64xf32>, vector<64x256xf32>, vector<2x256xf32> -> vector<2x256xf32>
    %77 = vector.extract_strided_slice %6 {offsets = [2, 0, 0], sizes = [1, 2, 256], strides = [1, 1, 1]} : vector<8x2x256xf32> to vector<1x2x256xf32>
    %78 = vector.shape_cast %77 : vector<1x2x256xf32> to vector<2x256xf32>
    %79 = arith.addf %76, %78 : vector<2x256xf32>
    %80 = arith.negf %79 : vector<2x256xf32>
    %81 = math.exp %80 : vector<2x256xf32>
    %cst_29 = arith.constant 1.000000e+00 : f32
    %82 = vector.broadcast %cst_29 : f32 to vector<2x256xf32>
    %83 = arith.addf %82, %81 : vector<2x256xf32>
    %84 = arith.divf %82, %83 : vector<2x256xf32>
    %85 = vector.extract_strided_slice %84 {offsets = [0, 0], sizes = [2, 32], strides = [1, 1]} : vector<2x256xf32> to vector<2x32xf32>
    %86 = vector.extract_strided_slice %84 {offsets = [0, 32], sizes = [2, 32], strides = [1, 1]} : vector<2x256xf32> to vector<2x32xf32>
    %87 = vector.extract_strided_slice %84 {offsets = [0, 64], sizes = [2, 32], strides = [1, 1]} : vector<2x256xf32> to vector<2x32xf32>
    %cst_30 = arith.constant 2.000000e+00 : f32
    %88 = vector.broadcast %cst_30 : f32 to vector<2x32xf32>
    %89 = arith.mulf %88, %87 : vector<2x32xf32>
    %cst_31 = arith.constant 1.000000e+00 : f32
    %90 = vector.broadcast %cst_31 : f32 to vector<2x32xf32>
    %91 = arith.subf %89, %90 : vector<2x32xf32>
    %92 = vector.extract_strided_slice %84 {offsets = [0, 96], sizes = [2, 32], strides = [1, 1]} : vector<2x256xf32> to vector<2x32xf32>
    %93 = arith.mulf %86, %59 : vector<2x32xf32>
    %94 = arith.mulf %85, %91 : vector<2x32xf32>
    %95 = arith.addf %93, %94 : vector<2x32xf32>
    %96 = math.tanh %95 : vector<2x32xf32>
    %97 = arith.mulf %92, %96 : vector<2x32xf32>
    %98 = vector.extract_strided_slice %84 {offsets = [0, 128], sizes = [2, 32], strides = [1, 1]} : vector<2x256xf32> to vector<2x32xf32>
    %99 = vector.extract_strided_slice %84 {offsets = [0, 160], sizes = [2, 32], strides = [1, 1]} : vector<2x256xf32> to vector<2x32xf32>
    %100 = vector.extract_strided_slice %84 {offsets = [0, 192], sizes = [2, 32], strides = [1, 1]} : vector<2x256xf32> to vector<2x32xf32>
    %cst_32 = arith.constant 2.000000e+00 : f32
    %101 = vector.broadcast %cst_32 : f32 to vector<2x32xf32>
    %102 = arith.mulf %101, %100 : vector<2x32xf32>
    %cst_33 = arith.constant 1.000000e+00 : f32
    %103 = vector.broadcast %cst_33 : f32 to vector<2x32xf32>
    %104 = arith.subf %102, %103 : vector<2x32xf32>
    %105 = vector.extract_strided_slice %84 {offsets = [0, 224], sizes = [2, 32], strides = [1, 1]} : vector<2x256xf32> to vector<2x32xf32>
    %106 = arith.mulf %99, %72 : vector<2x32xf32>
    %107 = arith.mulf %98, %104 : vector<2x32xf32>
    %108 = arith.addf %106, %107 : vector<2x32xf32>
    %109 = math.tanh %108 : vector<2x32xf32>
    %110 = arith.mulf %105, %109 : vector<2x32xf32>
    %111 = tpu.concatenate %97, %110 in 1 : vector<2x32xf32>, vector<2x32xf32> -> vector<2x64xf32>
    %cst_34 = arith.constant dense<0.000000e+00> : vector<2x256xf32>
    %112 = tpu.matmul %111, %7, %cst_34 {dimension_numbers = #tpu.dot_dimension_numbers<[1], [0], [0], [1], [0, 0, 1, 1], [], []>} : vector<2x64xf32>, vector<64x256xf32>, vector<2x256xf32> -> vector<2x256xf32>
    %113 = vector.extract_strided_slice %6 {offsets = [3, 0, 0], sizes = [1, 2, 256], strides = [1, 1, 1]} : vector<8x2x256xf32> to vector<1x2x256xf32>
    %114 = vector.shape_cast %113 : vector<1x2x256xf32> to vector<2x256xf32>
    %115 = arith.addf %112, %114 : vector<2x256xf32>
    %116 = arith.negf %115 : vector<2x256xf32>
    %117 = math.exp %116 : vector<2x256xf32>
    %cst_35 = arith.constant 1.000000e+00 : f32
    %118 = vector.broadcast %cst_35 : f32 to vector<2x256xf32>
    %119 = arith.addf %118, %117 : vector<2x256xf32>
    %120 = arith.divf %118, %119 : vector<2x256xf32>
    %121 = vector.extract_strided_slice %120 {offsets = [0, 0], sizes = [2, 32], strides = [1, 1]} : vector<2x256xf32> to vector<2x32xf32>
    %122 = vector.extract_strided_slice %120 {offsets = [0, 32], sizes = [2, 32], strides = [1, 1]} : vector<2x256xf32> to vector<2x32xf32>
    %123 = vector.extract_strided_slice %120 {offsets = [0, 64], sizes = [2, 32], strides = [1, 1]} : vector<2x256xf32> to vector<2x32xf32>
    %cst_36 = arith.constant 2.000000e+00 : f32
    %124 = vector.broadcast %cst_36 : f32 to vector<2x32xf32>
    %125 = arith.mulf %124, %123 : vector<2x32xf32>
    %cst_37 = arith.constant 1.000000e+00 : f32
    %126 = vector.broadcast %cst_37 : f32 to vector<2x32xf32>
    %127 = arith.subf %125, %126 : vector<2x32xf32>
    %128 = vector.extract_strided_slice %120 {offsets = [0, 96], sizes = [2, 32], strides = [1, 1]} : vector<2x256xf32> to vector<2x32xf32>
    %129 = arith.mulf %122, %95 : vector<2x32xf32>
    %130 = arith.mulf %121, %127 : vector<2x32xf32>
    %131 = arith.addf %129, %130 : vector<2x32xf32>
    %132 = math.tanh %131 : vector<2x32xf32>
    %133 = arith.mulf %128, %132 : vector<2x32xf32>
    %134 = vector.extract_strided_slice %120 {offsets = [0, 128], sizes = [2, 32], strides = [1, 1]} : vector<2x256xf32> to vector<2x32xf32>
    %135 = vector.extract_strided_slice %120 {offsets = [0, 160], sizes = [2, 32], strides = [1, 1]} : vector<2x256xf32> to vector<2x32xf32>
    %136 = vector.extract_strided_slice %120 {offsets = [0, 192], sizes = [2, 32], strides = [1, 1]} : vector<2x256xf32> to vector<2x32xf32>
    %cst_38 = arith.constant 2.000000e+00 : f32
    %137 = vector.broadcast %cst_38 : f32 to vector<2x32xf32>
    %138 = arith.mulf %137, %136 : vector<2x32xf32>
    %cst_39 = arith.constant 1.000000e+00 : f32
    %139 = vector.broadcast %cst_39 : f32 to vector<2x32xf32>
    %140 = arith.subf %138, %139 : vector<2x32xf32>
    %141 = vector.extract_strided_slice %120 {offsets = [0, 224], sizes = [2, 32], strides = [1, 1]} : vector<2x256xf32> to vector<2x32xf32>
    %142 = arith.mulf %135, %108 : vector<2x32xf32>
    %143 = arith.mulf %134, %140 : vector<2x32xf32>
    %144 = arith.addf %142, %143 : vector<2x32xf32>
    %145 = math.tanh %144 : vector<2x32xf32>
    %146 = arith.mulf %141, %145 : vector<2x32xf32>
    %147 = tpu.concatenate %133, %146 in 1 : vector<2x32xf32>, vector<2x32xf32> -> vector<2x64xf32>
    %cst_40 = arith.constant dense<0.000000e+00> : vector<2x256xf32>
    %148 = tpu.matmul %147, %7, %cst_40 {dimension_numbers = #tpu.dot_dimension_numbers<[1], [0], [0], [1], [0, 0, 1, 1], [], []>} : vector<2x64xf32>, vector<64x256xf32>, vector<2x256xf32> -> vector<2x256xf32>
    %149 = vector.extract_strided_slice %6 {offsets = [4, 0, 0], sizes = [1, 2, 256], strides = [1, 1, 1]} : vector<8x2x256xf32> to vector<1x2x256xf32>
    %150 = vector.shape_cast %149 : vector<1x2x256xf32> to vector<2x256xf32>
    %151 = arith.addf %148, %150 : vector<2x256xf32>
    %152 = arith.negf %151 : vector<2x256xf32>
    %153 = math.exp %152 : vector<2x256xf32>
    %cst_41 = arith.constant 1.000000e+00 : f32
    %154 = vector.broadcast %cst_41 : f32 to vector<2x256xf32>
    %155 = arith.addf %154, %153 : vector<2x256xf32>
    %156 = arith.divf %154, %155 : vector<2x256xf32>
    %157 = vector.extract_strided_slice %156 {offsets = [0, 0], sizes = [2, 32], strides = [1, 1]} : vector<2x256xf32> to vector<2x32xf32>
    %158 = vector.extract_strided_slice %156 {offsets = [0, 32], sizes = [2, 32], strides = [1, 1]} : vector<2x256xf32> to vector<2x32xf32>
    %159 = vector.extract_strided_slice %156 {offsets = [0, 64], sizes = [2, 32], strides = [1, 1]} : vector<2x256xf32> to vector<2x32xf32>
    %cst_42 = arith.constant 2.000000e+00 : f32
    %160 = vector.broadcast %cst_42 : f32 to vector<2x32xf32>
    %161 = arith.mulf %160, %159 : vector<2x32xf32>
    %cst_43 = arith.constant 1.000000e+00 : f32
    %162 = vector.broadcast %cst_43 : f32 to vector<2x32xf32>
    %163 = arith.subf %161, %162 : vector<2x32xf32>
    %164 = vector.extract_strided_slice %156 {offsets = [0, 96], sizes = [2, 32], strides = [1, 1]} : vector<2x256xf32> to vector<2x32xf32>
    %165 = arith.mulf %158, %131 : vector<2x32xf32>
    %166 = arith.mulf %157, %163 : vector<2x32xf32>
    %167 = arith.addf %165, %166 : vector<2x32xf32>
    %168 = math.tanh %167 : vector<2x32xf32>
    %169 = arith.mulf %164, %168 : vector<2x32xf32>
    %170 = vector.extract_strided_slice %156 {offsets = [0, 128], sizes = [2, 32], strides = [1, 1]} : vector<2x256xf32> to vector<2x32xf32>
    %171 = vector.extract_strided_slice %156 {offsets = [0, 160], sizes = [2, 32], strides = [1, 1]} : vector<2x256xf32> to vector<2x32xf32>
    %172 = vector.extract_strided_slice %156 {offsets = [0, 192], sizes = [2, 32], strides = [1, 1]} : vector<2x256xf32> to vector<2x32xf32>
    %cst_44 = arith.constant 2.000000e+00 : f32
    %173 = vector.broadcast %cst_44 : f32 to vector<2x32xf32>
    %174 = arith.mulf %173, %172 : vector<2x32xf32>
    %cst_45 = arith.constant 1.000000e+00 : f32
    %175 = vector.broadcast %cst_45 : f32 to vector<2x32xf32>
    %176 = arith.subf %174, %175 : vector<2x32xf32>
    %177 = vector.extract_strided_slice %156 {offsets = [0, 224], sizes = [2, 32], strides = [1, 1]} : vector<2x256xf32> to vector<2x32xf32>
    %178 = arith.mulf %171, %144 : vector<2x32xf32>
    %179 = arith.mulf %170, %176 : vector<2x32xf32>
    %180 = arith.addf %178, %179 : vector<2x32xf32>
    %181 = math.tanh %180 : vector<2x32xf32>
    %182 = arith.mulf %177, %181 : vector<2x32xf32>
    %183 = tpu.concatenate %169, %182 in 1 : vector<2x32xf32>, vector<2x32xf32> -> vector<2x64xf32>
    %cst_46 = arith.constant dense<0.000000e+00> : vector<2x256xf32>
    %184 = tpu.matmul %183, %7, %cst_46 {dimension_numbers = #tpu.dot_dimension_numbers<[1], [0], [0], [1], [0, 0, 1, 1], [], []>} : vector<2x64xf32>, vector<64x256xf32>, vector<2x256xf32> -> vector<2x256xf32>
    %185 = vector.extract_strided_slice %6 {offsets = [5, 0, 0], sizes = [1, 2, 256], strides = [1, 1, 1]} : vector<8x2x256xf32> to vector<1x2x256xf32>
    %186 = vector.shape_cast %185 : vector<1x2x256xf32> to vector<2x256xf32>
    %187 = arith.addf %184, %186 : vector<2x256xf32>
    %188 = arith.negf %187 : vector<2x256xf32>
    %189 = math.exp %188 : vector<2x256xf32>
    %cst_47 = arith.constant 1.000000e+00 : f32
    %190 = vector.broadcast %cst_47 : f32 to vector<2x256xf32>
    %191 = arith.addf %190, %189 : vector<2x256xf32>
    %192 = arith.divf %190, %191 : vector<2x256xf32>
    %193 = vector.extract_strided_slice %192 {offsets = [0, 0], sizes = [2, 32], strides = [1, 1]} : vector<2x256xf32> to vector<2x32xf32>
    %194 = vector.extract_strided_slice %192 {offsets = [0, 32], sizes = [2, 32], strides = [1, 1]} : vector<2x256xf32> to vector<2x32xf32>
    %195 = vector.extract_strided_slice %192 {offsets = [0, 64], sizes = [2, 32], strides = [1, 1]} : vector<2x256xf32> to vector<2x32xf32>
    %cst_48 = arith.constant 2.000000e+00 : f32
    %196 = vector.broadcast %cst_48 : f32 to vector<2x32xf32>
    %197 = arith.mulf %196, %195 : vector<2x32xf32>
    %cst_49 = arith.constant 1.000000e+00 : f32
    %198 = vector.broadcast %cst_49 : f32 to vector<2x32xf32>
    %199 = arith.subf %197, %198 : vector<2x32xf32>
    %200 = vector.extract_strided_slice %192 {offsets = [0, 96], sizes = [2, 32], strides = [1, 1]} : vector<2x256xf32> to vector<2x32xf32>
    %201 = arith.mulf %194, %167 : vector<2x32xf32>
    %202 = arith.mulf %193, %199 : vector<2x32xf32>
    %203 = arith.addf %201, %202 : vector<2x32xf32>
    %204 = math.tanh %203 : vector<2x32xf32>
    %205 = arith.mulf %200, %204 : vector<2x32xf32>
    %206 = vector.extract_strided_slice %192 {offsets = [0, 128], sizes = [2, 32], strides = [1, 1]} : vector<2x256xf32> to vector<2x32xf32>
    %207 = vector.extract_strided_slice %192 {offsets = [0, 160], sizes = [2, 32], strides = [1, 1]} : vector<2x256xf32> to vector<2x32xf32>
    %208 = vector.extract_strided_slice %192 {offsets = [0, 192], sizes = [2, 32], strides = [1, 1]} : vector<2x256xf32> to vector<2x32xf32>
    %cst_50 = arith.constant 2.000000e+00 : f32
    %209 = vector.broadcast %cst_50 : f32 to vector<2x32xf32>
    %210 = arith.mulf %209, %208 : vector<2x32xf32>
    %cst_51 = arith.constant 1.000000e+00 : f32
    %211 = vector.broadcast %cst_51 : f32 to vector<2x32xf32>
    %212 = arith.subf %210, %211 : vector<2x32xf32>
    %213 = vector.extract_strided_slice %192 {offsets = [0, 224], sizes = [2, 32], strides = [1, 1]} : vector<2x256xf32> to vector<2x32xf32>
    %214 = arith.mulf %207, %180 : vector<2x32xf32>
    %215 = arith.mulf %206, %212 : vector<2x32xf32>
    %216 = arith.addf %214, %215 : vector<2x32xf32>
    %217 = math.tanh %216 : vector<2x32xf32>
    %218 = arith.mulf %213, %217 : vector<2x32xf32>
    %219 = tpu.concatenate %205, %218 in 1 : vector<2x32xf32>, vector<2x32xf32> -> vector<2x64xf32>
    %cst_52 = arith.constant dense<0.000000e+00> : vector<2x256xf32>
    %220 = tpu.matmul %219, %7, %cst_52 {dimension_numbers = #tpu.dot_dimension_numbers<[1], [0], [0], [1], [0, 0, 1, 1], [], []>} : vector<2x64xf32>, vector<64x256xf32>, vector<2x256xf32> -> vector<2x256xf32>
    %221 = vector.extract_strided_slice %6 {offsets = [6, 0, 0], sizes = [1, 2, 256], strides = [1, 1, 1]} : vector<8x2x256xf32> to vector<1x2x256xf32>
    %222 = vector.shape_cast %221 : vector<1x2x256xf32> to vector<2x256xf32>
    %223 = arith.addf %220, %222 : vector<2x256xf32>
    %224 = arith.negf %223 : vector<2x256xf32>
    %225 = math.exp %224 : vector<2x256xf32>
    %cst_53 = arith.constant 1.000000e+00 : f32
    %226 = vector.broadcast %cst_53 : f32 to vector<2x256xf32>
    %227 = arith.addf %226, %225 : vector<2x256xf32>
    %228 = arith.divf %226, %227 : vector<2x256xf32>
    %229 = vector.extract_strided_slice %228 {offsets = [0, 0], sizes = [2, 32], strides = [1, 1]} : vector<2x256xf32> to vector<2x32xf32>
    %230 = vector.extract_strided_slice %228 {offsets = [0, 32], sizes = [2, 32], strides = [1, 1]} : vector<2x256xf32> to vector<2x32xf32>
    %231 = vector.extract_strided_slice %228 {offsets = [0, 64], sizes = [2, 32], strides = [1, 1]} : vector<2x256xf32> to vector<2x32xf32>
    %cst_54 = arith.constant 2.000000e+00 : f32
    %232 = vector.broadcast %cst_54 : f32 to vector<2x32xf32>
    %233 = arith.mulf %232, %231 : vector<2x32xf32>
    %cst_55 = arith.constant 1.000000e+00 : f32
    %234 = vector.broadcast %cst_55 : f32 to vector<2x32xf32>
    %235 = arith.subf %233, %234 : vector<2x32xf32>
    %236 = vector.extract_strided_slice %228 {offsets = [0, 96], sizes = [2, 32], strides = [1, 1]} : vector<2x256xf32> to vector<2x32xf32>
    %237 = arith.mulf %230, %203 : vector<2x32xf32>
    %238 = arith.mulf %229, %235 : vector<2x32xf32>
    %239 = arith.addf %237, %238 : vector<2x32xf32>
    %240 = math.tanh %239 : vector<2x32xf32>
    %241 = arith.mulf %236, %240 : vector<2x32xf32>
    %242 = vector.extract_strided_slice %228 {offsets = [0, 128], sizes = [2, 32], strides = [1, 1]} : vector<2x256xf32> to vector<2x32xf32>
    %243 = vector.extract_strided_slice %228 {offsets = [0, 160], sizes = [2, 32], strides = [1, 1]} : vector<2x256xf32> to vector<2x32xf32>
    %244 = vector.extract_strided_slice %228 {offsets = [0, 192], sizes = [2, 32], strides = [1, 1]} : vector<2x256xf32> to vector<2x32xf32>
    %cst_56 = arith.constant 2.000000e+00 : f32
    %245 = vector.broadcast %cst_56 : f32 to vector<2x32xf32>
    %246 = arith.mulf %245, %244 : vector<2x32xf32>
    %cst_57 = arith.constant 1.000000e+00 : f32
    %247 = vector.broadcast %cst_57 : f32 to vector<2x32xf32>
    %248 = arith.subf %246, %247 : vector<2x32xf32>
    %249 = vector.extract_strided_slice %228 {offsets = [0, 224], sizes = [2, 32], strides = [1, 1]} : vector<2x256xf32> to vector<2x32xf32>
    %250 = arith.mulf %243, %216 : vector<2x32xf32>
    %251 = arith.mulf %242, %248 : vector<2x32xf32>
    %252 = arith.addf %250, %251 : vector<2x32xf32>
    %253 = math.tanh %252 : vector<2x32xf32>
    %254 = arith.mulf %249, %253 : vector<2x32xf32>
    %255 = tpu.concatenate %241, %254 in 1 : vector<2x32xf32>, vector<2x32xf32> -> vector<2x64xf32>
    %cst_58 = arith.constant dense<0.000000e+00> : vector<2x256xf32>
    %256 = tpu.matmul %255, %7, %cst_58 {dimension_numbers = #tpu.dot_dimension_numbers<[1], [0], [0], [1], [0, 0, 1, 1], [], []>} : vector<2x64xf32>, vector<64x256xf32>, vector<2x256xf32> -> vector<2x256xf32>
    %257 = vector.extract_strided_slice %6 {offsets = [7, 0, 0], sizes = [1, 2, 256], strides = [1, 1, 1]} : vector<8x2x256xf32> to vector<1x2x256xf32>
    %258 = vector.shape_cast %257 : vector<1x2x256xf32> to vector<2x256xf32>
    %259 = arith.addf %256, %258 : vector<2x256xf32>
    %260 = arith.negf %259 : vector<2x256xf32>
    %261 = math.exp %260 : vector<2x256xf32>
    %cst_59 = arith.constant 1.000000e+00 : f32
    %262 = vector.broadcast %cst_59 : f32 to vector<2x256xf32>
    %263 = arith.addf %262, %261 : vector<2x256xf32>
    %264 = arith.divf %262, %263 : vector<2x256xf32>
    %265 = vector.extract_strided_slice %264 {offsets = [0, 0], sizes = [2, 32], strides = [1, 1]} : vector<2x256xf32> to vector<2x32xf32>
    %266 = vector.extract_strided_slice %264 {offsets = [0, 32], sizes = [2, 32], strides = [1, 1]} : vector<2x256xf32> to vector<2x32xf32>
    %267 = vector.extract_strided_slice %264 {offsets = [0, 64], sizes = [2, 32], strides = [1, 1]} : vector<2x256xf32> to vector<2x32xf32>
    %cst_60 = arith.constant 2.000000e+00 : f32
    %268 = vector.broadcast %cst_60 : f32 to vector<2x32xf32>
    %269 = arith.mulf %268, %267 : vector<2x32xf32>
    %cst_61 = arith.constant 1.000000e+00 : f32
    %270 = vector.broadcast %cst_61 : f32 to vector<2x32xf32>
    %271 = arith.subf %269, %270 : vector<2x32xf32>
    %272 = vector.extract_strided_slice %264 {offsets = [0, 96], sizes = [2, 32], strides = [1, 1]} : vector<2x256xf32> to vector<2x32xf32>
    %273 = arith.mulf %266, %239 : vector<2x32xf32>
    %274 = arith.mulf %265, %271 : vector<2x32xf32>
    %275 = arith.addf %273, %274 : vector<2x32xf32>
    %276 = math.tanh %275 : vector<2x32xf32>
    %277 = arith.mulf %272, %276 : vector<2x32xf32>
    %278 = vector.extract_strided_slice %264 {offsets = [0, 128], sizes = [2, 32], strides = [1, 1]} : vector<2x256xf32> to vector<2x32xf32>
    %279 = vector.extract_strided_slice %264 {offsets = [0, 160], sizes = [2, 32], strides = [1, 1]} : vector<2x256xf32> to vector<2x32xf32>
    %280 = vector.extract_strided_slice %264 {offsets = [0, 192], sizes = [2, 32], strides = [1, 1]} : vector<2x256xf32> to vector<2x32xf32>
    %cst_62 = arith.constant 2.000000e+00 : f32
    %281 = vector.broadcast %cst_62 : f32 to vector<2x32xf32>
    %282 = arith.mulf %281, %280 : vector<2x32xf32>
    %cst_63 = arith.constant 1.000000e+00 : f32
    %283 = vector.broadcast %cst_63 : f32 to vector<2x32xf32>
    %284 = arith.subf %282, %283 : vector<2x32xf32>
    %285 = vector.extract_strided_slice %264 {offsets = [0, 224], sizes = [2, 32], strides = [1, 1]} : vector<2x256xf32> to vector<2x32xf32>
    %286 = arith.mulf %279, %252 : vector<2x32xf32>
    %287 = arith.mulf %278, %284 : vector<2x32xf32>
    %288 = arith.addf %286, %287 : vector<2x32xf32>
    %289 = math.tanh %288 : vector<2x32xf32>
    %290 = arith.mulf %285, %289 : vector<2x32xf32>
    %291 = tpu.concatenate %277, %290 in 1 : vector<2x32xf32>, vector<2x32xf32> -> vector<2x64xf32>
    %cst_64 = arith.constant dense<0.000000e+00> : vector<2x256xf32>
    %292 = tpu.matmul %291, %7, %cst_64 {dimension_numbers = #tpu.dot_dimension_numbers<[1], [0], [0], [1], [0, 0, 1, 1], [], []>} : vector<2x64xf32>, vector<64x256xf32>, vector<2x256xf32> -> vector<2x256xf32>
    %293 = vector.extract_strided_slice %6 {offsets = [7, 0, 0], sizes = [1, 2, 256], strides = [1, 1, 1]} : vector<8x2x256xf32> to vector<1x2x256xf32>
    %294 = vector.shape_cast %293 : vector<1x2x256xf32> to vector<2x256xf32>
    %295 = arith.addf %292, %294 : vector<2x256xf32>
    %296 = arith.negf %295 : vector<2x256xf32>
    %297 = math.exp %296 : vector<2x256xf32>
    %cst_65 = arith.constant 1.000000e+00 : f32
    %298 = vector.broadcast %cst_65 : f32 to vector<2x256xf32>
    %299 = arith.addf %298, %297 : vector<2x256xf32>
    %300 = arith.divf %298, %299 : vector<2x256xf32>
    %301 = vector.extract_strided_slice %300 {offsets = [0, 128], sizes = [2, 32], strides = [1, 1]} : vector<2x256xf32> to vector<2x32xf32>
    %302 = vector.extract_strided_slice %300 {offsets = [0, 160], sizes = [2, 32], strides = [1, 1]} : vector<2x256xf32> to vector<2x32xf32>
    %303 = vector.extract_strided_slice %300 {offsets = [0, 192], sizes = [2, 32], strides = [1, 1]} : vector<2x256xf32> to vector<2x32xf32>
    %cst_66 = arith.constant 2.000000e+00 : f32
    %304 = vector.broadcast %cst_66 : f32 to vector<2x32xf32>
    %305 = arith.mulf %304, %303 : vector<2x32xf32>
    %cst_67 = arith.constant 1.000000e+00 : f32
    %306 = vector.broadcast %cst_67 : f32 to vector<2x32xf32>
    %307 = arith.subf %305, %306 : vector<2x32xf32>
    %308 = vector.extract_strided_slice %300 {offsets = [0, 224], sizes = [2, 32], strides = [1, 1]} : vector<2x256xf32> to vector<2x32xf32>
    %309 = arith.mulf %302, %288 : vector<2x32xf32>
    %310 = arith.mulf %301, %307 : vector<2x32xf32>
    %311 = arith.addf %309, %310 : vector<2x32xf32>
    %312 = math.tanh %311 : vector<2x32xf32>
    %313 = arith.mulf %308, %312 : vector<2x32xf32>
    %c0_68 = arith.constant 0 : index
    %c0_69 = arith.constant 0 : index
    %314 = vector.load %arg6[%c0_68, %c0_69] : memref<32x32xf32, #tpu.memory_space<vmem>>, vector<32x32xf32>
    %cst_70 = arith.constant dense<0.000000e+00> : vector<2x32xf32>
    %315 = tpu.matmul %313, %314, %cst_70 {dimension_numbers = #tpu.dot_dimension_numbers<[1], [0], [0], [1], [0, 0, 1, 1], [], []>} : vector<2x32xf32>, vector<32x32xf32>, vector<2x32xf32> -> vector<2x32xf32>
    %c0_71 = arith.constant 0 : index
    %c0_72 = arith.constant 0 : index
    %316 = vector.load %arg7[%c0_71, %c0_72] : memref<1x32xf32, #tpu.memory_space<vmem>>, vector<1x32xf32>
    %317 = vector.broadcast %316 : vector<1x32xf32> to vector<2x32xf32>
    %318 = arith.addf %315, %317 : vector<2x32xf32>
    %319 = tpu.concatenate %277, %313, %275, %311, %318 in 0 : vector<2x32xf32>, vector<2x32xf32>, vector<2x32xf32>, vector<2x32xf32>, vector<2x32xf32> -> vector<10x32xf32>
    %c0_73 = arith.constant 0 : index
    %c0_74 = arith.constant 0 : index
    %320 = vector.load %arg8[%c0_73, %c0_74] : memref<10x32xf32, #tpu.memory_space<vmem>>, vector<10x32xf32>
    tpu.vector_store %arg8[%c0_73, %c0_74], %319 {strides = array<i32>} : memref<10x32xf32, #tpu.memory_space<vmem>>, vector<10x32xf32>,
    return
  }
}

</mosaic_0001>

<llo_original>
// kernel: tpu_custom_call.1
$region0: #{tpu_custom_call.1}
  #allocation0 [shape = 'u32[]', space=smem, size = 0x4, offset = 0x4, fixed_abs, tag = 'smem constant byte address 0x4 - core index']
  #allocation1 [shape = 'u32[144,128]{1,0:T(1,128)}', space=vmem, size = 0x12000, scoped, tag = 'internal scratch']
  %s0 = inlined_call_operand.hbm [shape: f32[16,16], index: 0, kind: input, shape index: {}]
  %s1 = inlined_call_operand.hbm [shape: f32[2,2,32], index: 1, kind: input, shape index: {}]
  %s2 = inlined_call_operand.hbm [shape: f32[2,2,32], index: 2, kind: input, shape index: {}]
  %s3 = inlined_call_operand.hbm [shape: f32[16,256], index: 3, kind: input, shape index: {}]
  %s4 = inlined_call_operand.vmem [shape: f32[1,256], index: 4, kind: input, shape index: {}]
  %s5 = inlined_call_operand.hbm [shape: f32[64,256], index: 5, kind: input, shape index: {}]
  %s6 = inlined_call_operand.hbm [shape: f32[32,32], index: 6, kind: input, shape index: {}]
  %s7 = inlined_call_operand.vmem [shape: f32[1,32], index: 7, kind: input, shape index: {}]
  %s8 = inlined_call_operand.hbm [shape: f32[10,32], index: 8, kind: output, shape index: {}]
  %s9 = sld [smem:[#allocation0]]
  $region66: #{tpu_custom_call.1} parent=0
    _
  %s11 = ssub.s32 1, %s9
  %s12 = scalar_select 0, %s11, %s9
  $region1: #{tpu_custom_call.1} parent=0
    #allocation2 [shape = 'u8[8192]{0}', space=vmem, size = 0x2000, scoped, tag = 'input window, operand 0, single buffered']
    #allocation3 [shape = 's32[1]{0}', space=sflag, size = 0x4, scoped, tag = 'scoped memory for tpu_custom_call.1']
    #allocation4 [shape = 's32[1]{0}', space=sflag, size = 0x4, scoped, tag = 'scoped memory for tpu_custom_call.1']
    #allocation5 [shape = 'u8[2048]{0}', space=vmem, size = 0x800, scoped, tag = 'input window, operand 1, single buffered']
    #allocation6 [shape = 's32[1]{0}', space=sflag, size = 0x4, scoped, tag = 'scoped memory for tpu_custom_call.1']
    #allocation7 [shape = 'u8[2048]{0}', space=vmem, size = 0x800, scoped, tag = 'input window, operand 2, single buffered']
    #allocation8 [shape = 'u8[16384]{0}', space=vmem, size = 0x4000, scoped, tag = 'input window, operand 3, single buffered']
    #allocation9 [shape = 's32[1]{0}', space=sflag, size = 0x4, scoped, tag = 'scoped memory for tpu_custom_call.1']
    #allocation10 [shape = 'u8[65536]{0}', space=vmem, size = 0x10000, scoped, tag = 'input window, operand 5, single buffered']
    #allocation11 [shape = 'u8[16384]{0}', space=vmem, size = 0x4000, scoped, tag = 'input window, operand 6, single buffered']
    #allocation12 [shape = 's32[1]{0}', space=sflag, size = 0x4, scoped, tag = 'scoped memory for tpu_custom_call.1']
    #allocation13 [shape = 'u8[8192]{0}', space=vmem, size = 0x2000, scoped, tag = 'output window, operand 0, single buffered']
    %13 = vsyncpa [#allocation3], 0
    %14 = vsyncpa [#allocation6], 0
    %15 = vsyncpa [#allocation9], 0
    %16 = vsyncpa [#allocation12], 0
    %17 = vsyncpa [#allocation4], 0
    // Predicated region
    $region2: #{tpu_custom_call.1} parent=1 // pred_check
      _
    $region3: #{tpu_custom_call.1} parent=1 // pred_check_branch
      %19 = sbr.rel (0) target = $region5
    $region4: #{tpu_custom_call.1} parent=1 // pred_region
      %s21 = ssub.s32 256, 256
      %22 = vsyncadd [#allocation3], %s21
      %s23 = sshll.u32 [#allocation2], 4
      %s24 = int_to_ptr.vmem [resolvable:$true] %s23
      %29 = dma.hbm_to_vmem [thread:$0]  %s0, 256, %s24, [#allocation3], 128, 128, 8
    $region5: #{tpu_custom_call.1} parent=1 // pred_fallthru
      _
    // Predicated region
    $region6: #{tpu_custom_call.1} parent=1 // pred_check
      _
    $region7: #{tpu_custom_call.1} parent=1 // pred_check_branch
      %31 = sbr.rel (0) target = $region9
    $region8: #{tpu_custom_call.1} parent=1 // pred_region
      %s33 = ssub.s32 64, 64
      %34 = vsyncadd [#allocation6], %s33
      %s35 = sshll.u32 [#allocation5], 4
      %s36 = int_to_ptr.vmem [resolvable:$true] %s35
      %41 = dma.hbm_to_vmem [thread:$0]  %s1, 64, %s36, [#allocation6], 32, 32, 2
    $region9: #{tpu_custom_call.1} parent=1 // pred_fallthru
      _
    // Predicated region
    $region10: #{tpu_custom_call.1} parent=1 // pred_check
      _
    $region11: #{tpu_custom_call.1} parent=1 // pred_check_branch
      %43 = sbr.rel (0) target = $region13
    $region12: #{tpu_custom_call.1} parent=1 // pred_region
      %s45 = ssub.s32 64, 64
      %46 = vsyncadd [#allocation6], %s45
      %s47 = sshll.u32 [#allocation7], 4
      %s48 = int_to_ptr.vmem [resolvable:$true] %s47
      %53 = dma.hbm_to_vmem [thread:$0]  %s2, 64, %s48, [#allocation6], 32, 32, 2
    $region13: #{tpu_custom_call.1} parent=1 // pred_fallthru
      _
    // Predicated region
    $region14: #{tpu_custom_call.1} parent=1 // pred_check
      _
    $region15: #{tpu_custom_call.1} parent=1 // pred_check_branch
      %55 = sbr.rel (0) target = $region17
    $region16: #{tpu_custom_call.1} parent=1 // pred_region
      %s57 = ssub.s32 512, 512
      %58 = vsyncadd [#allocation9], %s57
      %s59 = sshll.u32 [#allocation8], 4
      %s60 = int_to_ptr.vmem [resolvable:$true] %s59
      %65 = dma.hbm_to_vmem [thread:$0]  %s3, 512, %s60, [#allocation9], 256, 256, 16
    $region17: #{tpu_custom_call.1} parent=1 // pred_fallthru
      _
    // Predicated region
    $region18: #{tpu_custom_call.1} parent=1 // pred_check
      _
    $region19: #{tpu_custom_call.1} parent=1 // pred_check_branch
      %67 = sbr.rel (0) target = $region21
    $region20: #{tpu_custom_call.1} parent=1 // pred_region
      _
    $region21: #{tpu_custom_call.1} parent=1 // pred_fallthru
      _
    // Predicated region
    $region22: #{tpu_custom_call.1} parent=1 // pred_check
      _
    $region23: #{tpu_custom_call.1} parent=1 // pred_check_branch
      %69 = sbr.rel (0) target = $region25
    $region24: #{tpu_custom_call.1} parent=1 // pred_region
      %s71 = ssub.s32 2048, 2048
      %72 = vsyncadd [#allocation9], %s71
      %s73 = sshll.u32 [#allocation10], 4
      %s74 = int_to_ptr.vmem [resolvable:$true] %s73
      %79 = dma.hbm_to_vmem [thread:$0]  %s5, 2048, %s74, [#allocation9], 256, 256, 16
    $region25: #{tpu_custom_call.1} parent=1 // pred_fallthru
      _
    // Predicated region
    $region26: #{tpu_custom_call.1} parent=1 // pred_check
      _
    $region27: #{tpu_custom_call.1} parent=1 // pred_check_branch
      %81 = sbr.rel (0) target = $region29
    $region28: #{tpu_custom_call.1} parent=1 // pred_region
      %s83 = ssub.s32 512, 512
      %84 = vsyncadd [#allocation12], %s83
      %s85 = sshll.u32 [#allocation11], 4
      %s86 = int_to_ptr.vmem [resolvable:$true] %s85
      %91 = dma.hbm_to_vmem [thread:$0]  %s6, 512, %s86, [#allocation12], 128, 128, 8
    $region29: #{tpu_custom_call.1} parent=1 // pred_fallthru
      _
    // Predicated region
    $region30: #{tpu_custom_call.1} parent=1 // pred_check
      _
    $region31: #{tpu_custom_call.1} parent=1 // pred_check_branch
      %93 = sbr.rel (0) target = $region33
    $region32: #{tpu_custom_call.1} parent=1 // pred_region
      _
    $region33: #{tpu_custom_call.1} parent=1 // pred_fallthru
      _
    // Predicated region
    $region34: #{tpu_custom_call.1} parent=1 // pred_check
      _
    $region35: #{tpu_custom_call.1} parent=1 // pred_check_branch
      %95 = sbr.rel (0) target = $region37
    $region36: #{tpu_custom_call.1} parent=1 // pred_region
      %96 = dma.done [#allocation3], 256
    $region37: #{tpu_custom_call.1} parent=1 // pred_fallthru
      _
    // Predicated region
    $region38: #{tpu_custom_call.1} parent=1 // pred_check
      _
    $region39: #{tpu_custom_call.1} parent=1 // pred_check_branch
      %98 = sbr.rel (0) target = $region41
    $region40: #{tpu_custom_call.1} parent=1 // pred_region
      %99 = dma.done [#allocation6], 64
    $region41: #{tpu_custom_call.1} parent=1 // pred_fallthru
      _
    // Predicated region
    $region42: #{tpu_custom_call.1} parent=1 // pred_check
      _
    $region43: #{tpu_custom_call.1} parent=1 // pred_check_branch
      %101 = sbr.rel (0) target = $region45
    $region44: #{tpu_custom_call.1} parent=1 // pred_region
      %102 = dma.done [#allocation6], 64
    $region45: #{tpu_custom_call.1} parent=1 // pred_fallthru
      _
    // Predicated region
    $region46: #{tpu_custom_call.1} parent=1 // pred_check
      _
    $region47: #{tpu_custom_call.1} parent=1 // pred_check_branch
      %104 = sbr.rel (0) target = $region49
    $region48: #{tpu_custom_call.1} parent=1 // pred_region
      %105 = dma.done [#allocation9], 512
    $region49: #{tpu_custom_call.1} parent=1 // pred_fallthru
      _
    // Predicated region
    $region50: #{tpu_custom_call.1} parent=1 // pred_check
      _
    $region51: #{tpu_custom_call.1} parent=1 // pred_check_branch
      %107 = sbr.rel (0) target = $region53
    $region52: #{tpu_custom_call.1} parent=1 // pred_region
      %108 = dma.done [#allocation9], 2048
    $region53: #{tpu_custom_call.1} parent=1 // pred_fallthru
      _
    // Predicated region
    $region54: #{tpu_custom_call.1} parent=1 // pred_check
      _
    $region55: #{tpu_custom_call.1} parent=1 // pred_check_branch
      %110 = sbr.rel (0) target = $region57
    $region56: #{tpu_custom_call.1} parent=1 // pred_region
      %111 = dma.done [#allocation12], 512
    $region57: #{tpu_custom_call.1} parent=1 // pred_fallthru
      _
    %v112 = vld [vmem:[#allocation2] sm:$0xff]
    %v113 = vld [vmem:[#allocation2 + $0x8] sm:$0xff]
    %v114 = vld [vmem:[#allocation8] sm:$0xff]
    %v115 = vld [vmem:[#allocation8 + $0x8] sm:$0xff]
    %v116 = vld [vmem:[#allocation8 + $0x10] sm:$0xff]
    %v117 = vld [vmem:[#allocation8 + $0x18] sm:$0xff]
    %v118 = vld [vmem:[%s4] sm:$0x3]
    %v120 = vlaneseq
    %v121 = vshrl.u32 %v120, 7
    %v122 = vsub.s32 0, %v121
    %v123 = vrot.slane %v118, %v122
    %v124 = vlaneseq
    %v125 = vshrl.u32 %v124, 7
    %v126 = vsub.s32 1, %v125
    %v127 = vrot.slane %v118, %v126
    %vm130 = vcmask 130048
    %v132 = vsel %vm130, %v112, 0
    %v135 = vsel %vm130, %v113, 0
    %137 = vmatprep.subr.mxu0 0.0
    %138 = vmatpush1.msra.mxu0 0.0
    %139 = vmatprep.subr.mxu0 0.0
    %140 = vmatpush1.msra.mxu0 0.0
    %141 = vmatprep.subr.mxu0 0.0
    %142 = vmatpush1.msra.mxu0 0.0
    %143 = vmatprep.subr.mxu0 0.0
    %144 = vmatpush1.msra.mxu0 0.0
    %145 = vmatprep.subr.mxu0 0.0
    %146 = vmatpush1.msra.mxu0 0.0
    %147 = vmatprep.subr.mxu0 0.0
    %148 = vmatpush1.msra.mxu0 0.0
    %149 = vmatprep.subr.mxu0 0.0
    %150 = vmatpush1.msra.mxu0 0.0
    %151 = vmatprep.subr.mxu0 0.0
    %152 = vmatpush1.msra.mxu0 0.0
    %153 = vmatprep.subr.mxu0 0.0
    %154 = vmatpush1.msra.mxu0 0.0
    %155 = vmatprep.subr.mxu0 0.0
    %156 = vmatpush1.msra.mxu0 0.0
    %157 = vmatprep.subr.mxu0 0.0
    %158 = vmatpush1.msra.mxu0 0.0
    %159 = vmatprep.subr.mxu0 0.0
    %160 = vmatpush1.msra.mxu0 0.0
    %161 = vmatprep.subr.mxu0 0.0
    %162 = vmatpush1.msra.mxu0 0.0
    %163 = vmatprep.subr.mxu0 0.0
    %164 = vmatpush1.msra.mxu0 0.0
    %165 = vmatprep.subr.mxu0 %v117
    %166 = vmatpush1.msra.mxu0 %v116
    %167 = vmatprep.subr.mxu0 %v115
    %168 = vmatpush1.msra.mxu0 %v114
    %169 = vmatprep.subr.mxu0 0.0
    %170 = vmatpush2.msra.mxu0 0.0
    %171 = vmatprep.subr.mxu0 0.0
    %172 = vmatpush2.msra.mxu0 0.0
    %173 = vmatprep.subr.mxu0 0.0
    %174 = vmatpush2.msra.mxu0 0.0
    %175 = vmatprep.subr.mxu0 0.0
    %176 = vmatpush2.msra.mxu0 0.0
    %177 = vmatprep.subr.mxu0 0.0
    %178 = vmatpush2.msra.mxu0 0.0
    %179 = vmatprep.subr.mxu0 0.0
    %180 = vmatpush2.msra.mxu0 0.0
    %181 = vmatprep.subr.mxu0 0.0
    %182 = vmatpush2.msra.mxu0 0.0
    %183 = vmatprep.subr.mxu0 0.0
    %184 = vmatpush2.msra.mxu0 0.0
    %185 = vmatprep.subr.mxu0 0.0
    %186 = vmatpush2.msra.mxu0 0.0
    %187 = vmatprep.subr.mxu0 0.0
    %188 = vmatpush2.msra.mxu0 0.0
    %189 = vmatprep.subr.mxu0 0.0
    %190 = vmatpush2.msra.mxu0 0.0
    %191 = vmatprep.subr.mxu0 0.0
    %192 = vmatpush2.msra.mxu0 0.0
    %193 = vmatprep.subr.mxu0 0.0
    %194 = vmatpush2.msra.mxu0 0.0
    %195 = vmatprep.subr.mxu0 0.0
    %196 = vmatpush2.msra.mxu0 0.0
    %197 = vmatprep.subr.mxu0 0.0
    %198 = vmatpush2.msra.mxu0 0.0
    %199 = vmatprep.subr.mxu0 0.0
    %200 = vmatpush2.msra.mxu0 0.0
    %201 = vmatprep.mubr.f32.mxu0 0.0
    %202 = vmatmul.mubr.f32.gmra.mxu0 %v132
    %v203 = vpop.f32.mrf.mxu0
    %v204 = vadd.f32 %v123, %v203
    %v205 = vpop.f32.mrf.mxu0
    %v206 = vadd.f32 %v127, %v205
    %207 = vmatprep.mubr.f32.mxu0 0.0
    %208 = vmatmul.mubr.f32.gmra.mxu0 %v135
    %v209 = vpop.f32.mrf.mxu0
    %v210 = vadd.f32 %v123, %v209
    %v211 = vpop.f32.mrf.mxu0
    %v212 = vadd.f32 %v127, %v211
    %213 = vdwg.mxu0
    %v218 = vcombine.low %v204, %v206
    %v219 = vcombine.high %v204, %v206
    %v221 = vunpack.c.l.s4 1983009808
    %v222 = vunpack.c.0.s8 %v221
    %v223 = vlaneseq
    %v224 = vshrl.u32 %v223, 7
    %v225 = vsub.s32 %v222, %v224
    %v226 = vrot.slane %v218, %v225
    %v228 = vunpack.c.l.s4 1983009808
    %v229 = vunpack.c.0.s8 %v228
    %v230 = vlaneseq
    %v231 = vshrl.u32 %v230, 7
    %v232 = vsub.s32 %v229, %v231
    %v233 = vrot.slane %v219, %v232
    %v234 = vcombine.high %v226, %v226
    %v235 = vcombine.high %v233, %v233
    %v236 = vcombine.low %v210, %v212
    %v237 = vcombine.high %v210, %v212
    %v239 = vunpack.c.l.s4 1983009808
    %v240 = vunpack.c.0.s8 %v239
    %v241 = vlaneseq
    %v242 = vshrl.u32 %v241, 7
    %v243 = vsub.s32 %v240, %v242
    %v244 = vrot.slane %v236, %v243
    %v246 = vunpack.c.l.s4 1983009808
    %v247 = vunpack.c.0.s8 %v246
    %v248 = vlaneseq
    %v249 = vshrl.u32 %v248, 7
    %v250 = vsub.s32 %v247, %v249
    %v251 = vrot.slane %v237, %v250
    %v252 = vcombine.high %v244, %v244
    %v253 = vcombine.high %v251, %v251
    %v254 = vld [vmem:[#allocation10] sm:$0xff]
    %v255 = vld [vmem:[#allocation10 + $0x8] sm:$0xff]
    %v256 = vld [vmem:[#allocation10 + $0x10] sm:$0xff]
    %v257 = vld [vmem:[#allocation10 + $0x18] sm:$0xff]
    %v258 = vld [vmem:[#allocation10 + $0x20] sm:$0xff]
    %v259 = vld [vmem:[#allocation10 + $0x28] sm:$0xff]
    %v260 = vld [vmem:[#allocation10 + $0x30] sm:$0xff]
    %v261 = vld [vmem:[#allocation10 + $0x38] sm:$0xff]
    %v262 = vld [vmem:[#allocation10 + $0x40] sm:$0xff]
    %v263 = vld [vmem:[#allocation10 + $0x48] sm:$0xff]
    %v264 = vld [vmem:[#allocation10 + $0x50] sm:$0xff]
    %v265 = vld [vmem:[#allocation10 + $0x58] sm:$0xff]
    %v266 = vld [vmem:[#allocation10 + $0x60] sm:$0xff]
    %v267 = vld [vmem:[#allocation10 + $0x68] sm:$0xff]
    %v268 = vld [vmem:[#allocation10 + $0x70] sm:$0xff]
    %v269 = vld [vmem:[#allocation10 + $0x78] sm:$0xff]
    %v270 = vld [vmem:[#allocation5] sm:$0x3]
    %s271 = scalar_lea.vmem [#allocation5], 2
    %v272 = vld [vmem:[%s271] sm:$0x3]
    %v273 = vld [vmem:[#allocation7] sm:$0x3]
    %s274 = scalar_lea.vmem [#allocation7], 2
    %v275 = vld [vmem:[%s274] sm:$0x3]
    %277 = vrot.lane.b32.xlu0 %v272, 32
    %v278 = vpop.permute.xlu0 %277
    %vm280 = vcmask 261120
    %v281 = vsel %vm280, %v270, %v278
    %v283 = vunpack.c.l.s4 1983009808
    %v284 = vunpack.c.0.s8 %v283
    %v285 = vlaneseq
    %v286 = vshrl.u32 %v285, 7
    %v287 = vsub.s32 %v284, %v286
    %v288 = vrot.slane %v226, %v287
    %vm290 = vcmask 523264
    %v292 = vsel %vm290, %v281, 0
    %294 = vmatprep.subr.mxu0 0.0
    %295 = vmatpush1.msra.mxu0 0.0
    %296 = vmatprep.subr.mxu0 0.0
    %297 = vmatpush1.msra.mxu0 0.0
    %298 = vmatprep.subr.mxu0 0.0
    %299 = vmatpush1.msra.mxu0 0.0
    %300 = vmatprep.subr.mxu0 0.0
    %301 = vmatpush1.msra.mxu0 0.0
    %302 = vmatprep.subr.mxu0 0.0
    %303 = vmatpush1.msra.mxu0 0.0
    %304 = vmatprep.subr.mxu0 0.0
    %305 = vmatpush1.msra.mxu0 0.0
    %306 = vmatprep.subr.mxu0 0.0
    %307 = vmatpush1.msra.mxu0 0.0
    %308 = vmatprep.subr.mxu0 0.0
    %309 = vmatpush1.msra.mxu0 0.0
    %310 = vmatprep.subr.mxu0 %v269
    %311 = vmatpush1.msra.mxu0 %v268
    %312 = vmatprep.subr.mxu0 %v267
    %313 = vmatpush1.msra.mxu0 %v266
    %314 = vmatprep.subr.mxu0 %v265
    %315 = vmatpush1.msra.mxu0 %v264
    %316 = vmatprep.subr.mxu0 %v263
    %317 = vmatpush1.msra.mxu0 %v262
    %318 = vmatprep.subr.mxu0 %v261
    %319 = vmatpush1.msra.mxu0 %v260
    %320 = vmatprep.subr.mxu0 %v259
    %321 = vmatpush1.msra.mxu0 %v258
    %322 = vmatprep.subr.mxu0 %v257
    %323 = vmatpush1.msra.mxu0 %v256
    %324 = vmatprep.subr.mxu0 %v255
    %325 = vmatpush1.msra.mxu0 %v254
    %326 = vmatprep.subr.mxu0 0.0
    %327 = vmatpush2.msra.mxu0 0.0
    %328 = vmatprep.subr.mxu0 0.0
    %329 = vmatpush2.msra.mxu0 0.0
    %330 = vmatprep.subr.mxu0 0.0
    %331 = vmatpush2.msra.mxu0 0.0
    %332 = vmatprep.subr.mxu0 0.0
    %333 = vmatpush2.msra.mxu0 0.0
    %334 = vmatprep.subr.mxu0 0.0
    %335 = vmatpush2.msra.mxu0 0.0
    %336 = vmatprep.subr.mxu0 0.0
    %337 = vmatpush2.msra.mxu0 0.0
    %338 = vmatprep.subr.mxu0 0.0
    %339 = vmatpush2.msra.mxu0 0.0
    %340 = vmatprep.subr.mxu0 0.0
    %341 = vmatpush2.msra.mxu0 0.0
    %342 = vmatprep.subr.mxu0 0.0
    %343 = vmatpush2.msra.mxu0 0.0
    %344 = vmatprep.subr.mxu0 0.0
    %345 = vmatpush2.msra.mxu0 0.0
    %346 = vmatprep.subr.mxu0 0.0
    %347 = vmatpush2.msra.mxu0 0.0
    %348 = vmatprep.subr.mxu0 0.0
    %349 = vmatpush2.msra.mxu0 0.0
    %350 = vmatprep.subr.mxu0 0.0
    %351 = vmatpush2.msra.mxu0 0.0
    %352 = vmatprep.subr.mxu0 0.0
    %353 = vmatpush2.msra.mxu0 0.0
    %354 = vmatprep.subr.mxu0 0.0
    %355 = vmatpush2.msra.mxu0 0.0
    %356 = vmatprep.subr.mxu0 0.0
    %357 = vmatpush2.msra.mxu0 0.0
    %358 = vmatprep.mubr.f32.mxu0 0.0
    %359 = vmatmul.mubr.f32.gmra.mxu0 %v292
    %v360 = vpop.f32.mrf.mxu0
    %v361 = vadd.f32 %v288, %v360
    %v362 = vpop.f32.mrf.mxu0
    %363 = vdwg.mxu0
    %v364 = vxor.u32 %v361, 2147483648
    %v365 = vmul.f32 %v364, 1.442695
    %v366 = vpow.pop %v365
    %v367 = vadd.f32 %v366, 1.0
    %v368 = vrcp.pop %v367
    %v369 = vmul.f32 1.0, %v368
    %v370 = vmul.f32 %v369, 2.0
    %v371 = vsub.f32 %v370, 1.0
    %373 = vrot.lane.b32.xlu0 %v273, 32
    %v374 = vpop.permute.xlu0 %373
    %v376 = vmul.f32 %v369, %v374
    %378 = vrot.lane.b32.xlu0 %v371, 64
    %v379 = vpop.permute.xlu0 %378
    %v381 = vmul.f32 %v369, %v379
    %383 = vrot.lane.b32.xlu0 %v381, 32
    %v384 = vpop.permute.xlu0 %383
    %v386 = vadd.f32 %v376, %v384
    %v387 = vtanh.pop %v386
    %389 = vrot.lane.b32.xlu0 %v387, 64
    %v390 = vpop.permute.xlu0 %389
    %v392 = vmul.f32 %v369, %v390
    %394 = vrot.lane.b32.xlu0 %v392, 32
    %v395 = vpop.permute.xlu0 %394
    %v397 = vsel %vm280, %v395, %v278
    %v399 = vunpack.c.l.s4 1983009808
    %v400 = vunpack.c.0.s8 %v399
    %v401 = vlaneseq
    %v402 = vshrl.u32 %v401, 7
    %v403 = vsub.s32 %v400, %v402
    %v404 = vrot.slane %v234, %v403
    %v405 = vcombine.high %v404, %v404
    %v409 = vsel %vm290, %v397, 0
    %411 = vmatprep.subr.mxu0 0.0
    %412 = vmatpush1.msra.mxu0 0.0
    %413 = vmatprep.subr.mxu0 0.0
    %414 = vmatpush1.msra.mxu0 0.0
    %415 = vmatprep.subr.mxu0 0.0
    %416 = vmatpush1.msra.mxu0 0.0
    %417 = vmatprep.subr.mxu0 0.0
    %418 = vmatpush1.msra.mxu0 0.0
    %419 = vmatprep.subr.mxu0 0.0
    %420 = vmatpush1.msra.mxu0 0.0
    %421 = vmatprep.subr.mxu0 0.0
    %422 = vmatpush1.msra.mxu0 0.0
    %423 = vmatprep.subr.mxu0 0.0
    %424 = vmatpush1.msra.mxu0 0.0
    %425 = vmatprep.subr.mxu0 0.0
    %426 = vmatpush1.msra.mxu0 0.0
    %427 = vmatprep.subr.mxu0 %v269
    %428 = vmatpush1.msra.mxu0 %v268
    %429 = vmatprep.subr.mxu0 %v267
    %430 = vmatpush1.msra.mxu0 %v266
    %431 = vmatprep.subr.mxu0 %v265
    %432 = vmatpush1.msra.mxu0 %v264
    %433 = vmatprep.subr.mxu0 %v263
    %434 = vmatpush1.msra.mxu0 %v262
    %435 = vmatprep.subr.mxu0 %v261
    %436 = vmatpush1.msra.mxu0 %v260
    %437 = vmatprep.subr.mxu0 %v259
    %438 = vmatpush1.msra.mxu0 %v258
    %439 = vmatprep.subr.mxu0 %v257
    %440 = vmatpush1.msra.mxu0 %v256
    %441 = vmatprep.subr.mxu0 %v255
    %442 = vmatpush1.msra.mxu0 %v254
    %443 = vmatprep.subr.mxu0 0.0
    %444 = vmatpush2.msra.mxu0 0.0
    %445 = vmatprep.subr.mxu0 0.0
    %446 = vmatpush2.msra.mxu0 0.0
    %447 = vmatprep.subr.mxu0 0.0
    %448 = vmatpush2.msra.mxu0 0.0
    %449 = vmatprep.subr.mxu0 0.0
    %450 = vmatpush2.msra.mxu0 0.0
    %451 = vmatprep.subr.mxu0 0.0
    %452 = vmatpush2.msra.mxu0 0.0
    %453 = vmatprep.subr.mxu0 0.0
    %454 = vmatpush2.msra.mxu0 0.0
    %455 = vmatprep.subr.mxu0 0.0
    %456 = vmatpush2.msra.mxu0 0.0
    %457 = vmatprep.subr.mxu0 0.0
    %458 = vmatpush2.msra.mxu0 0.0
    %459 = vmatprep.subr.mxu0 0.0
    %460 = vmatpush2.msra.mxu0 0.0
    %461 = vmatprep.subr.mxu0 0.0
    %462 = vmatpush2.msra.mxu0 0.0
    %463 = vmatprep.subr.mxu0 0.0
    %464 = vmatpush2.msra.mxu0 0.0
    %465 = vmatprep.subr.mxu0 0.0
    %466 = vmatpush2.msra.mxu0 0.0
    %467 = vmatprep.subr.mxu0 0.0
    %468 = vmatpush2.msra.mxu0 0.0
    %469 = vmatprep.subr.mxu0 0.0
    %470 = vmatpush2.msra.mxu0 0.0
    %471 = vmatprep.subr.mxu0 0.0
    %472 = vmatpush2.msra.mxu0 0.0
    %473 = vmatprep.subr.mxu0 0.0
    %474 = vmatpush2.msra.mxu0 0.0
    %475 = vmatprep.mubr.f32.mxu0 0.0
    %476 = vmatmul.mubr.f32.gmra.mxu0 %v409
    %v477 = vpop.f32.mrf.mxu0
    %v478 = vadd.f32 %v404, %v477
    %v479 = vpop.f32.mrf.mxu0
    %v480 = vadd.f32 %v405, %v479
    %481 = vdwg.mxu0
    %v482 = vxor.u32 %v478, 2147483648
    %v483 = vxor.u32 %v480, 2147483648
    %v484 = vmul.f32 %v482, 1.442695
    %v485 = vpow.pop %v484
    %v486 = vmul.f32 %v483, 1.442695
    %v487 = vpow.pop %v486
    %v488 = vadd.f32 %v485, 1.0
    %v489 = vadd.f32 %v487, 1.0
    %v490 = vrcp.pop %v488
    %v491 = vmul.f32 1.0, %v490
    %v492 = vrcp.pop %v489
    %v493 = vmul.f32 1.0, %v492
    %v494 = vmul.f32 %v491, 2.0
    %v495 = vsub.f32 %v494, 1.0
    %v496 = vmul.f32 %v491, %v386
    %498 = vrot.lane.b32.xlu0 %v495, 64
    %v499 = vpop.permute.xlu0 %498
    %v501 = vmul.f32 %v491, %v499
    %503 = vrot.lane.b32.xlu0 %v501, 32
    %v504 = vpop.permute.xlu0 %503
    %v506 = vadd.f32 %v496, %v504
    %v507 = vtanh.pop %v506
    %509 = vrot.lane.b32.xlu0 %v507, 64
    %v510 = vpop.permute.xlu0 %509
    %v512 = vmul.f32 %v491, %v510
    %v513 = vmul.f32 %v493, 2.0
    %v514 = vsub.f32 %v513, 1.0
    %516 = vrot.lane.b32.xlu0 %v275, 32
    %v517 = vpop.permute.xlu0 %516
    %v519 = vmul.f32 %v493, %v517
    %521 = vrot.lane.b32.xlu0 %v514, 64
    %v522 = vpop.permute.xlu0 %521
    %v524 = vmul.f32 %v493, %v522
    %526 = vrot.lane.b32.xlu0 %v524, 32
    %v527 = vpop.permute.xlu0 %526
    %v529 = vadd.f32 %v519, %v527
    %v530 = vtanh.pop %v529
    %532 = vrot.lane.b32.xlu0 %v530, 64
    %v533 = vpop.permute.xlu0 %532
    %v535 = vmul.f32 %v493, %v533
    %537 = vrot.lane.b32.xlu0 %v512, 32
    %v538 = vpop.permute.xlu0 %537
    %541 = vrot.lane.b32.xlu0 %v535, 64
    %v542 = vpop.permute.xlu0 %541
    %v544 = vsel %vm280, %v538, %v542
    %v546 = vunpack.c.l.s4 1983009808
    %v547 = vunpack.c.0.s8 %v546
    %v548 = vlaneseq
    %v549 = vshrl.u32 %v548, 7
    %v550 = vsub.s32 %v547, %v549
    %v551 = vrot.slane %v233, %v550
    %v552 = vcombine.high %v551, %v551
    %v556 = vsel %vm290, %v544, 0
    %558 = vmatprep.subr.mxu0 0.0
    %559 = vmatpush1.msra.mxu0 0.0
    %560 = vmatprep.subr.mxu0 0.0
    %561 = vmatpush1.msra.mxu0 0.0
    %562 = vmatprep.subr.mxu0 0.0
    %563 = vmatpush1.msra.mxu0 0.0
    %564 = vmatprep.subr.mxu0 0.0
    %565 = vmatpush1.msra.mxu0 0.0
    %566 = vmatprep.subr.mxu0 0.0
    %567 = vmatpush1.msra.mxu0 0.0
    %568 = vmatprep.subr.mxu0 0.0
    %569 = vmatpush1.msra.mxu0 0.0
    %570 = vmatprep.subr.mxu0 0.0
    %571 = vmatpush1.msra.mxu0 0.0
    %572 = vmatprep.subr.mxu0 0.0
    %573 = vmatpush1.msra.mxu0 0.0
    %574 = vmatprep.subr.mxu0 %v269
    %575 = vmatpush1.msra.mxu0 %v268
    %576 = vmatprep.subr.mxu0 %v267
    %577 = vmatpush1.msra.mxu0 %v266
    %578 = vmatprep.subr.mxu0 %v265
    %579 = vmatpush1.msra.mxu0 %v264
    %580 = vmatprep.subr.mxu0 %v263
    %581 = vmatpush1.msra.mxu0 %v262
    %582 = vmatprep.subr.mxu0 %v261
    %583 = vmatpush1.msra.mxu0 %v260
    %584 = vmatprep.subr.mxu0 %v259
    %585 = vmatpush1.msra.mxu0 %v258
    %586 = vmatprep.subr.mxu0 %v257
    %587 = vmatpush1.msra.mxu0 %v256
    %588 = vmatprep.subr.mxu0 %v255
    %589 = vmatpush1.msra.mxu0 %v254
    %590 = vmatprep.subr.mxu0 0.0
    %591 = vmatpush2.msra.mxu0 0.0
    %592 = vmatprep.subr.mxu0 0.0
    %593 = vmatpush2.msra.mxu0 0.0
    %594 = vmatprep.subr.mxu0 0.0
    %595 = vmatpush2.msra.mxu0 0.0
    %596 = vmatprep.subr.mxu0 0.0
    %597 = vmatpush2.msra.mxu0 0.0
    %598 = vmatprep.subr.mxu0 0.0
    %599 = vmatpush2.msra.mxu0 0.0
    %600 = vmatprep.subr.mxu0 0.0
    %601 = vmatpush2.msra.mxu0 0.0
    %602 = vmatprep.subr.mxu0 0.0
    %603 = vmatpush2.msra.mxu0 0.0
    %604 = vmatprep.subr.mxu0 0.0
    %605 = vmatpush2.msra.mxu0 0.0
    %606 = vmatprep.subr.mxu0 0.0
    %607 = vmatpush2.msra.mxu0 0.0
    %608 = vmatprep.subr.mxu0 0.0
    %609 = vmatpush2.msra.mxu0 0.0
    %610 = vmatprep.subr.mxu0 0.0
    %611 = vmatpush2.msra.mxu0 0.0
    %612 = vmatprep.subr.mxu0 0.0
    %613 = vmatpush2.msra.mxu0 0.0
    %614 = vmatprep.subr.mxu0 0.0
    %615 = vmatpush2.msra.mxu0 0.0
    %616 = vmatprep.subr.mxu0 0.0
    %617 = vmatpush2.msra.mxu0 0.0
    %618 = vmatprep.subr.mxu0 0.0
    %619 = vmatpush2.msra.mxu0 0.0
    %620 = vmatprep.subr.mxu0 0.0
    %621 = vmatpush2.msra.mxu0 0.0
    %622 = vmatprep.mubr.f32.mxu0 0.0
    %623 = vmatmul.mubr.f32.gmra.mxu0 %v556
    %v624 = vpop.f32.mrf.mxu0
    %v625 = vadd.f32 %v551, %v624
    %v626 = vpop.f32.mrf.mxu0
    %v627 = vadd.f32 %v552, %v626
    %628 = vdwg.mxu0
    %v629 = vxor.u32 %v625, 2147483648
    %v630 = vxor.u32 %v627, 2147483648
    %v631 = vmul.f32 %v629, 1.442695
    %v632 = vpow.pop %v631
    %v633 = vmul.f32 %v630, 1.442695
    %v634 = vpow.pop %v633
    %v635 = vadd.f32 %v632, 1.0
    %v636 = vadd.f32 %v634, 1.0
    %v637 = vrcp.pop %v635
    %v638 = vmul.f32 1.0, %v637
    %v639 = vrcp.pop %v636
    %v640 = vmul.f32 1.0, %v639
    %v641 = vmul.f32 %v638, 2.0
    %v642 = vsub.f32 %v641, 1.0
    %v643 = vmul.f32 %v638, %v506
    %645 = vrot.lane.b32.xlu0 %v642, 64
    %v646 = vpop.permute.xlu0 %645
    %v648 = vmul.f32 %v638, %v646
    %650 = vrot.lane.b32.xlu0 %v648, 32
    %v651 = vpop.permute.xlu0 %650
    %v653 = vadd.f32 %v643, %v651
    %v654 = vtanh.pop %v653
    %656 = vrot.lane.b32.xlu0 %v654, 64
    %v657 = vpop.permute.xlu0 %656
    %v659 = vmul.f32 %v638, %v657
    %v660 = vmul.f32 %v640, 2.0
    %v661 = vsub.f32 %v660, 1.0
    %v662 = vmul.f32 %v640, %v529
    %664 = vrot.lane.b32.xlu0 %v661, 64
    %v665 = vpop.permute.xlu0 %664
    %v667 = vmul.f32 %v640, %v665
    %669 = vrot.lane.b32.xlu0 %v667, 32
    %v670 = vpop.permute.xlu0 %669
    %v672 = vadd.f32 %v662, %v670
    %v673 = vtanh.pop %v672
    %675 = vrot.lane.b32.xlu0 %v673, 64
    %v676 = vpop.permute.xlu0 %675
    %v678 = vmul.f32 %v640, %v676
    %680 = vrot.lane.b32.xlu0 %v659, 32
    %v681 = vpop.permute.xlu0 %680
    %684 = vrot.lane.b32.xlu0 %v678, 64
    %v685 = vpop.permute.xlu0 %684
    %v687 = vsel %vm280, %v681, %v685
    %v689 = vunpack.c.l.s4 1983009808
    %v690 = vunpack.c.0.s8 %v689
    %v691 = vlaneseq
    %v692 = vshrl.u32 %v691, 7
    %v693 = vsub.s32 %v690, %v692
    %v694 = vrot.slane %v235, %v693
    %v695 = vcombine.high %v694, %v694
    %v699 = vsel %vm290, %v687, 0
    %701 = vmatprep.subr.mxu0 0.0
    %702 = vmatpush1.msra.mxu0 0.0
    %703 = vmatprep.subr.mxu0 0.0
    %704 = vmatpush1.msra.mxu0 0.0
    %705 = vmatprep.subr.mxu0 0.0
    %706 = vmatpush1.msra.mxu0 0.0
    %707 = vmatprep.subr.mxu0 0.0
    %708 = vmatpush1.msra.mxu0 0.0
    %709 = vmatprep.subr.mxu0 0.0
    %710 = vmatpush1.msra.mxu0 0.0
    %711 = vmatprep.subr.mxu0 0.0
    %712 = vmatpush1.msra.mxu0 0.0
    %713 = vmatprep.subr.mxu0 0.0
    %714 = vmatpush1.msra.mxu0 0.0
    %715 = vmatprep.subr.mxu0 0.0
    %716 = vmatpush1.msra.mxu0 0.0
    %717 = vmatprep.subr.mxu0 %v269
    %718 = vmatpush1.msra.mxu0 %v268
    %719 = vmatprep.subr.mxu0 %v267
    %720 = vmatpush1.msra.mxu0 %v266
    %721 = vmatprep.subr.mxu0 %v265
    %722 = vmatpush1.msra.mxu0 %v264
    %723 = vmatprep.subr.mxu0 %v263
    %724 = vmatpush1.msra.mxu0 %v262
    %725 = vmatprep.subr.mxu0 %v261
    %726 = vmatpush1.msra.mxu0 %v260
    %727 = vmatprep.subr.mxu0 %v259
    %728 = vmatpush1.msra.mxu0 %v258
    %729 = vmatprep.subr.mxu0 %v257
    %730 = vmatpush1.msra.mxu0 %v256
    %731 = vmatprep.subr.mxu0 %v255
    %732 = vmatpush1.msra.mxu0 %v254
    %733 = vmatprep.subr.mxu0 0.0
    %734 = vmatpush2.msra.mxu0 0.0
    %735 = vmatprep.subr.mxu0 0.0
    %736 = vmatpush2.msra.mxu0 0.0
    %737 = vmatprep.subr.mxu0 0.0
    %738 = vmatpush2.msra.mxu0 0.0
    %739 = vmatprep.subr.mxu0 0.0
    %740 = vmatpush2.msra.mxu0 0.0
    %741 = vmatprep.subr.mxu0 0.0
    %742 = vmatpush2.msra.mxu0 0.0
    %743 = vmatprep.subr.mxu0 0.0
    %744 = vmatpush2.msra.mxu0 0.0
    %745 = vmatprep.subr.mxu0 0.0
    %746 = vmatpush2.msra.mxu0 0.0
    %747 = vmatprep.subr.mxu0 0.0
    %748 = vmatpush2.msra.mxu0 0.0
    %749 = vmatprep.subr.mxu0 0.0
    %750 = vmatpush2.msra.mxu0 0.0
    %751 = vmatprep.subr.mxu0 0.0
    %752 = vmatpush2.msra.mxu0 0.0
    %753 = vmatprep.subr.mxu0 0.0
    %754 = vmatpush2.msra.mxu0 0.0
    %755 = vmatprep.subr.mxu0 0.0
    %756 = vmatpush2.msra.mxu0 0.0
    %757 = vmatprep.subr.mxu0 0.0
    %758 = vmatpush2.msra.mxu0 0.0
    %759 = vmatprep.subr.mxu0 0.0
    %760 = vmatpush2.msra.mxu0 0.0
    %761 = vmatprep.subr.mxu0 0.0
    %762 = vmatpush2.msra.mxu0 0.0
    %763 = vmatprep.subr.mxu0 0.0
    %764 = vmatpush2.msra.mxu0 0.0
    %765 = vmatprep.mubr.f32.mxu0 0.0
    %766 = vmatmul.mubr.f32.gmra.mxu0 %v699
    %v767 = vpop.f32.mrf.mxu0
    %v768 = vadd.f32 %v694, %v767
    %v769 = vpop.f32.mrf.mxu0
    %v770 = vadd.f32 %v695, %v769
    %771 = vdwg.mxu0
    %v772 = vxor.u32 %v768, 2147483648
    %v773 = vxor.u32 %v770, 2147483648
    %v774 = vmul.f32 %v772, 1.442695
    %v775 = vpow.pop %v774
    %v776 = vmul.f32 %v773, 1.442695
    %v777 = vpow.pop %v776
    %v778 = vadd.f32 %v775, 1.0
    %v779 = vadd.f32 %v777, 1.0
    %v780 = vrcp.pop %v778
    %v781 = vmul.f32 1.0, %v780
    %v782 = vrcp.pop %v779
    %v783 = vmul.f32 1.0, %v782
    %v784 = vmul.f32 %v781, 2.0
    %v785 = vsub.f32 %v784, 1.0
    %v786 = vmul.f32 %v781, %v653
    %788 = vrot.lane.b32.xlu0 %v785, 64
    %v789 = vpop.permute.xlu0 %788
    %v791 = vmul.f32 %v781, %v789
    %793 = vrot.lane.b32.xlu0 %v791, 32
    %v794 = vpop.permute.xlu0 %793
    %v796 = vadd.f32 %v786, %v794
    %v797 = vtanh.pop %v796
    %799 = vrot.lane.b32.xlu0 %v797, 64
    %v800 = vpop.permute.xlu0 %799
    %v802 = vmul.f32 %v781, %v800
    %v803 = vmul.f32 %v783, 2.0
    %v804 = vsub.f32 %v803, 1.0
    %v805 = vmul.f32 %v783, %v672
    %807 = vrot.lane.b32.xlu0 %v804, 64
    %v808 = vpop.permute.xlu0 %807
    %v810 = vmul.f32 %v783, %v808
    %812 = vrot.lane.b32.xlu0 %v810, 32
    %v813 = vpop.permute.xlu0 %812
    %v815 = vadd.f32 %v805, %v813
    %v816 = vtanh.pop %v815
    %818 = vrot.lane.b32.xlu0 %v816, 64
    %v819 = vpop.permute.xlu0 %818
    %v821 = vmul.f32 %v783, %v819
    %823 = vrot.lane.b32.xlu0 %v802, 32
    %v824 = vpop.permute.xlu0 %823
    %827 = vrot.lane.b32.xlu0 %v821, 64
    %v828 = vpop.permute.xlu0 %827
    %v830 = vsel %vm280, %v824, %v828
    %v832 = vunpack.c.l.s4 1983009808
    %v833 = vunpack.c.0.s8 %v832
    %v834 = vlaneseq
    %v835 = vshrl.u32 %v834, 7
    %v836 = vsub.s32 %v833, %v835
    %v837 = vrot.slane %v244, %v836
    %v838 = vcombine.high %v837, %v837
    %v842 = vsel %vm290, %v830, 0
    %844 = vmatprep.subr.mxu0 0.0
    %845 = vmatpush1.msra.mxu0 0.0
    %846 = vmatprep.subr.mxu0 0.0
    %847 = vmatpush1.msra.mxu0 0.0
    %848 = vmatprep.subr.mxu0 0.0
    %849 = vmatpush1.msra.mxu0 0.0
    %850 = vmatprep.subr.mxu0 0.0
    %851 = vmatpush1.msra.mxu0 0.0
    %852 = vmatprep.subr.mxu0 0.0
    %853 = vmatpush1.msra.mxu0 0.0
    %854 = vmatprep.subr.mxu0 0.0
    %855 = vmatpush1.msra.mxu0 0.0
    %856 = vmatprep.subr.mxu0 0.0
    %857 = vmatpush1.msra.mxu0 0.0
    %858 = vmatprep.subr.mxu0 0.0
    %859 = vmatpush1.msra.mxu0 0.0
    %860 = vmatprep.subr.mxu0 %v269
    %861 = vmatpush1.msra.mxu0 %v268
    %862 = vmatprep.subr.mxu0 %v267
    %863 = vmatpush1.msra.mxu0 %v266
    %864 = vmatprep.subr.mxu0 %v265
    %865 = vmatpush1.msra.mxu0 %v264
    %866 = vmatprep.subr.mxu0 %v263
    %867 = vmatpush1.msra.mxu0 %v262
    %868 = vmatprep.subr.mxu0 %v261
    %869 = vmatpush1.msra.mxu0 %v260
    %870 = vmatprep.subr.mxu0 %v259
    %871 = vmatpush1.msra.mxu0 %v258
    %872 = vmatprep.subr.mxu0 %v257
    %873 = vmatpush1.msra.mxu0 %v256
    %874 = vmatprep.subr.mxu0 %v255
    %875 = vmatpush1.msra.mxu0 %v254
    %876 = vmatprep.subr.mxu0 0.0
    %877 = vmatpush2.msra.mxu0 0.0
    %878 = vmatprep.subr.mxu0 0.0
    %879 = vmatpush2.msra.mxu0 0.0
    %880 = vmatprep.subr.mxu0 0.0
    %881 = vmatpush2.msra.mxu0 0.0
    %882 = vmatprep.subr.mxu0 0.0
    %883 = vmatpush2.msra.mxu0 0.0
    %884 = vmatprep.subr.mxu0 0.0
    %885 = vmatpush2.msra.mxu0 0.0
    %886 = vmatprep.subr.mxu0 0.0
    %887 = vmatpush2.msra.mxu0 0.0
    %888 = vmatprep.subr.mxu0 0.0
    %889 = vmatpush2.msra.mxu0 0.0
    %890 = vmatprep.subr.mxu0 0.0
    %891 = vmatpush2.msra.mxu0 0.0
    %892 = vmatprep.subr.mxu0 0.0
    %893 = vmatpush2.msra.mxu0 0.0
    %894 = vmatprep.subr.mxu0 0.0
    %895 = vmatpush2.msra.mxu0 0.0
    %896 = vmatprep.subr.mxu0 0.0
    %897 = vmatpush2.msra.mxu0 0.0
    %898 = vmatprep.subr.mxu0 0.0
    %899 = vmatpush2.msra.mxu0 0.0
    %900 = vmatprep.subr.mxu0 0.0
    %901 = vmatpush2.msra.mxu0 0.0
    %902 = vmatprep.subr.mxu0 0.0
    %903 = vmatpush2.msra.mxu0 0.0
    %904 = vmatprep.subr.mxu0 0.0
    %905 = vmatpush2.msra.mxu0 0.0
    %906 = vmatprep.subr.mxu0 0.0
    %907 = vmatpush2.msra.mxu0 0.0
    %908 = vmatprep.mubr.f32.mxu0 0.0
    %909 = vmatmul.mubr.f32.gmra.mxu0 %v842
    %v910 = vpop.f32.mrf.mxu0
    %v911 = vadd.f32 %v837, %v910
    %v912 = vpop.f32.mrf.mxu0
    %v913 = vadd.f32 %v838, %v912
    %914 = vdwg.mxu0
    %v915 = vxor.u32 %v911, 2147483648
    %v916 = vxor.u32 %v913, 2147483648
    %v917 = vmul.f32 %v915, 1.442695
    %v918 = vpow.pop %v917
    %v919 = vmul.f32 %v916, 1.442695
    %v920 = vpow.pop %v919
    %v921 = vadd.f32 %v918, 1.0
    %v922 = vadd.f32 %v920, 1.0
    %v923 = vrcp.pop %v921
    %v924 = vmul.f32 1.0, %v923
    %v925 = vrcp.pop %v922
    %v926 = vmul.f32 1.0, %v925
    %v927 = vmul.f32 %v924, 2.0
    %v928 = vsub.f32 %v927, 1.0
    %v929 = vmul.f32 %v924, %v796
    %931 = vrot.lane.b32.xlu0 %v928, 64
    %v932 = vpop.permute.xlu0 %931
    %v934 = vmul.f32 %v924, %v932
    %936 = vrot.lane.b32.xlu0 %v934, 32
    %v937 = vpop.permute.xlu0 %936
    %v939 = vadd.f32 %v929, %v937
    %v940 = vtanh.pop %v939
    %942 = vrot.lane.b32.xlu0 %v940, 64
    %v943 = vpop.permute.xlu0 %942
    %v945 = vmul.f32 %v924, %v943
    %v946 = vmul.f32 %v926, 2.0
    %v947 = vsub.f32 %v946, 1.0
    %v948 = vmul.f32 %v926, %v815
    %950 = vrot.lane.b32.xlu0 %v947, 64
    %v951 = vpop.permute.xlu0 %950
    %v953 = vmul.f32 %v926, %v951
    %955 = vrot.lane.b32.xlu0 %v953, 32
    %v956 = vpop.permute.xlu0 %955
    %v958 = vadd.f32 %v948, %v956
    %v959 = vtanh.pop %v958
    %961 = vrot.lane.b32.xlu0 %v959, 64
    %v962 = vpop.permute.xlu0 %961
    %v964 = vmul.f32 %v926, %v962
    %966 = vrot.lane.b32.xlu0 %v945, 32
    %v967 = vpop.permute.xlu0 %966
    %970 = vrot.lane.b32.xlu0 %v964, 64
    %v971 = vpop.permute.xlu0 %970
    %v973 = vsel %vm280, %v967, %v971
    %v975 = vunpack.c.l.s4 1983009808
    %v976 = vunpack.c.0.s8 %v975
    %v977 = vlaneseq
    %v978 = vshrl.u32 %v977, 7
    %v979 = vsub.s32 %v976, %v978
    %v980 = vrot.slane %v252, %v979
    %v981 = vcombine.high %v980, %v980
    %v985 = vsel %vm290, %v973, 0
    %987 = vmatprep.subr.mxu0 0.0
    %988 = vmatpush1.msra.mxu0 0.0
    %989 = vmatprep.subr.mxu0 0.0
    %990 = vmatpush1.msra.mxu0 0.0
    %991 = vmatprep.subr.mxu0 0.0
    %992 = vmatpush1.msra.mxu0 0.0
    %993 = vmatprep.subr.mxu0 0.0
    %994 = vmatpush1.msra.mxu0 0.0
    %995 = vmatprep.subr.mxu0 0.0
    %996 = vmatpush1.msra.mxu0 0.0
    %997 = vmatprep.subr.mxu0 0.0
    %998 = vmatpush1.msra.mxu0 0.0
    %999 = vmatprep.subr.mxu0 0.0
    %1000 = vmatpush1.msra.mxu0 0.0
    %1001 = vmatprep.subr.mxu0 0.0
    %1002 = vmatpush1.msra.mxu0 0.0
    %1003 = vmatprep.subr.mxu0 %v269
    %1004 = vmatpush1.msra.mxu0 %v268
    %1005 = vmatprep.subr.mxu0 %v267
    %1006 = vmatpush1.msra.mxu0 %v266
    %1007 = vmatprep.subr.mxu0 %v265
    %1008 = vmatpush1.msra.mxu0 %v264
    %1009 = vmatprep.subr.mxu0 %v263
    %1010 = vmatpush1.msra.mxu0 %v262
    %1011 = vmatprep.subr.mxu0 %v261
    %1012 = vmatpush1.msra.mxu0 %v260
    %1013 = vmatprep.subr.mxu0 %v259
    %1014 = vmatpush1.msra.mxu0 %v258
    %1015 = vmatprep.subr.mxu0 %v257
    %1016 = vmatpush1.msra.mxu0 %v256
    %1017 = vmatprep.subr.mxu0 %v255
    %1018 = vmatpush1.msra.mxu0 %v254
    %1019 = vmatprep.subr.mxu0 0.0
    %1020 = vmatpush2.msra.mxu0 0.0
    %1021 = vmatprep.subr.mxu0 0.0
    %1022 = vmatpush2.msra.mxu0 0.0
    %1023 = vmatprep.subr.mxu0 0.0
    %1024 = vmatpush2.msra.mxu0 0.0
    %1025 = vmatprep.subr.mxu0 0.0
    %1026 = vmatpush2.msra.mxu0 0.0
    %1027 = vmatprep.subr.mxu0 0.0
    %1028 = vmatpush2.msra.mxu0 0.0
    %1029 = vmatprep.subr.mxu0 0.0
    %1030 = vmatpush2.msra.mxu0 0.0
    %1031 = vmatprep.subr.mxu0 0.0
    %1032 = vmatpush2.msra.mxu0 0.0
    %1033 = vmatprep.subr.mxu0 0.0
    %1034 = vmatpush2.msra.mxu0 0.0
    %1035 = vmatprep.subr.mxu0 0.0
    %1036 = vmatpush2.msra.mxu0 0.0
    %1037 = vmatprep.subr.mxu0 0.0
    %1038 = vmatpush2.msra.mxu0 0.0
    %1039 = vmatprep.subr.mxu0 0.0
    %1040 = vmatpush2.msra.mxu0 0.0
    %1041 = vmatprep.subr.mxu0 0.0
    %1042 = vmatpush2.msra.mxu0 0.0
    %1043 = vmatprep.subr.mxu0 0.0
    %1044 = vmatpush2.msra.mxu0 0.0
    %1045 = vmatprep.subr.mxu0 0.0
    %1046 = vmatpush2.msra.mxu0 0.0
    %1047 = vmatprep.subr.mxu0 0.0
    %1048 = vmatpush2.msra.mxu0 0.0
    %1049 = vmatprep.subr.mxu0 0.0
    %1050 = vmatpush2.msra.mxu0 0.0
    %1051 = vmatprep.mubr.f32.mxu0 0.0
    %1052 = vmatmul.mubr.f32.gmra.mxu0 %v985
    %v1053 = vpop.f32.mrf.mxu0
    %v1054 = vadd.f32 %v980, %v1053
    %v1055 = vpop.f32.mrf.mxu0
    %v1056 = vadd.f32 %v981, %v1055
    %1057 = vdwg.mxu0
    %v1058 = vxor.u32 %v1054, 2147483648
    %v1059 = vxor.u32 %v1056, 2147483648
    %v1060 = vmul.f32 %v1058, 1.442695
    %v1061 = vpow.pop %v1060
    %v1062 = vmul.f32 %v1059, 1.442695
    %v1063 = vpow.pop %v1062
    %v1064 = vadd.f32 %v1061, 1.0
    %v1065 = vadd.f32 %v1063, 1.0
    %v1066 = vrcp.pop %v1064
    %v1067 = vmul.f32 1.0, %v1066
    %v1068 = vrcp.pop %v1065
    %v1069 = vmul.f32 1.0, %v1068
    %v1070 = vmul.f32 %v1067, 2.0
    %v1071 = vsub.f32 %v1070, 1.0
    %v1072 = vmul.f32 %v1067, %v939
    %1074 = vrot.lane.b32.xlu0 %v1071, 64
    %v1075 = vpop.permute.xlu0 %1074
    %v1077 = vmul.f32 %v1067, %v1075
    %1079 = vrot.lane.b32.xlu0 %v1077, 32
    %v1080 = vpop.permute.xlu0 %1079
    %v1082 = vadd.f32 %v1072, %v1080
    %v1083 = vtanh.pop %v1082
    %1085 = vrot.lane.b32.xlu0 %v1083, 64
    %v1086 = vpop.permute.xlu0 %1085
    %v1088 = vmul.f32 %v1067, %v1086
    %v1089 = vmul.f32 %v1069, 2.0
    %v1090 = vsub.f32 %v1089, 1.0
    %v1091 = vmul.f32 %v1069, %v958
    %1093 = vrot.lane.b32.xlu0 %v1090, 64
    %v1094 = vpop.permute.xlu0 %1093
    %v1096 = vmul.f32 %v1069, %v1094
    %1098 = vrot.lane.b32.xlu0 %v1096, 32
    %v1099 = vpop.permute.xlu0 %1098
    %v1101 = vadd.f32 %v1091, %v1099
    %v1102 = vtanh.pop %v1101
    %1104 = vrot.lane.b32.xlu0 %v1102, 64
    %v1105 = vpop.permute.xlu0 %1104
    %v1107 = vmul.f32 %v1069, %v1105
    %1109 = vrot.lane.b32.xlu0 %v1088, 32
    %v1110 = vpop.permute.xlu0 %1109
    %1113 = vrot.lane.b32.xlu0 %v1107, 64
    %v1114 = vpop.permute.xlu0 %1113
    %v1116 = vsel %vm280, %v1110, %v1114
    %v1118 = vunpack.c.l.s4 1983009808
    %v1119 = vunpack.c.0.s8 %v1118
    %v1120 = vlaneseq
    %v1121 = vshrl.u32 %v1120, 7
    %v1122 = vsub.s32 %v1119, %v1121
    %v1123 = vrot.slane %v251, %v1122
    %v1124 = vcombine.high %v1123, %v1123
    %v1128 = vsel %vm290, %v1116, 0
    %1130 = vmatprep.subr.mxu0 0.0
    %1131 = vmatpush1.msra.mxu0 0.0
    %1132 = vmatprep.subr.mxu0 0.0
    %1133 = vmatpush1.msra.mxu0 0.0
    %1134 = vmatprep.subr.mxu0 0.0
    %1135 = vmatpush1.msra.mxu0 0.0
    %1136 = vmatprep.subr.mxu0 0.0
    %1137 = vmatpush1.msra.mxu0 0.0
    %1138 = vmatprep.subr.mxu0 0.0
    %1139 = vmatpush1.msra.mxu0 0.0
    %1140 = vmatprep.subr.mxu0 0.0
    %1141 = vmatpush1.msra.mxu0 0.0
    %1142 = vmatprep.subr.mxu0 0.0
    %1143 = vmatpush1.msra.mxu0 0.0
    %1144 = vmatprep.subr.mxu0 0.0
    %1145 = vmatpush1.msra.mxu0 0.0
    %1146 = vmatprep.subr.mxu0 %v269
    %1147 = vmatpush1.msra.mxu0 %v268
    %1148 = vmatprep.subr.mxu0 %v267
    %1149 = vmatpush1.msra.mxu0 %v266
    %1150 = vmatprep.subr.mxu0 %v265
    %1151 = vmatpush1.msra.mxu0 %v264
    %1152 = vmatprep.subr.mxu0 %v263
    %1153 = vmatpush1.msra.mxu0 %v262
    %1154 = vmatprep.subr.mxu0 %v261
    %1155 = vmatpush1.msra.mxu0 %v260
    %1156 = vmatprep.subr.mxu0 %v259
    %1157 = vmatpush1.msra.mxu0 %v258
    %1158 = vmatprep.subr.mxu0 %v257
    %1159 = vmatpush1.msra.mxu0 %v256
    %1160 = vmatprep.subr.mxu0 %v255
    %1161 = vmatpush1.msra.mxu0 %v254
    %1162 = vmatprep.subr.mxu0 0.0
    %1163 = vmatpush2.msra.mxu0 0.0
    %1164 = vmatprep.subr.mxu0 0.0
    %1165 = vmatpush2.msra.mxu0 0.0
    %1166 = vmatprep.subr.mxu0 0.0
    %1167 = vmatpush2.msra.mxu0 0.0
    %1168 = vmatprep.subr.mxu0 0.0
    %1169 = vmatpush2.msra.mxu0 0.0
    %1170 = vmatprep.subr.mxu0 0.0
    %1171 = vmatpush2.msra.mxu0 0.0
    %1172 = vmatprep.subr.mxu0 0.0
    %1173 = vmatpush2.msra.mxu0 0.0
    %1174 = vmatprep.subr.mxu0 0.0
    %1175 = vmatpush2.msra.mxu0 0.0
    %1176 = vmatprep.subr.mxu0 0.0
    %1177 = vmatpush2.msra.mxu0 0.0
    %1178 = vmatprep.subr.mxu0 0.0
    %1179 = vmatpush2.msra.mxu0 0.0
    %1180 = vmatprep.subr.mxu0 0.0
    %1181 = vmatpush2.msra.mxu0 0.0
    %1182 = vmatprep.subr.mxu0 0.0
    %1183 = vmatpush2.msra.mxu0 0.0
    %1184 = vmatprep.subr.mxu0 0.0
    %1185 = vmatpush2.msra.mxu0 0.0
    %1186 = vmatprep.subr.mxu0 0.0
    %1187 = vmatpush2.msra.mxu0 0.0
    %1188 = vmatprep.subr.mxu0 0.0
    %1189 = vmatpush2.msra.mxu0 0.0
    %1190 = vmatprep.subr.mxu0 0.0
    %1191 = vmatpush2.msra.mxu0 0.0
    %1192 = vmatprep.subr.mxu0 0.0
    %1193 = vmatpush2.msra.mxu0 0.0
    %1194 = vmatprep.mubr.f32.mxu0 0.0
    %1195 = vmatmul.mubr.f32.gmra.mxu0 %v1128
    %v1196 = vpop.f32.mrf.mxu0
    %v1197 = vadd.f32 %v1123, %v1196
    %v1198 = vpop.f32.mrf.mxu0
    %v1199 = vadd.f32 %v1124, %v1198
    %1200 = vdwg.mxu0
    %v1201 = vxor.u32 %v1197, 2147483648
    %v1202 = vxor.u32 %v1199, 2147483648
    %v1203 = vmul.f32 %v1201, 1.442695
    %v1204 = vpow.pop %v1203
    %v1205 = vmul.f32 %v1202, 1.442695
    %v1206 = vpow.pop %v1205
    %v1207 = vadd.f32 %v1204, 1.0
    %v1208 = vadd.f32 %v1206, 1.0
    %v1209 = vrcp.pop %v1207
    %v1210 = vmul.f32 1.0, %v1209
    %v1211 = vrcp.pop %v1208
    %v1212 = vmul.f32 1.0, %v1211
    %v1213 = vmul.f32 %v1210, 2.0
    %v1214 = vsub.f32 %v1213, 1.0
    %v1215 = vmul.f32 %v1210, %v1082
    %1217 = vrot.lane.b32.xlu0 %v1214, 64
    %v1218 = vpop.permute.xlu0 %1217
    %v1220 = vmul.f32 %v1210, %v1218
    %1222 = vrot.lane.b32.xlu0 %v1220, 32
    %v1223 = vpop.permute.xlu0 %1222
    %v1225 = vadd.f32 %v1215, %v1223
    %v1226 = vtanh.pop %v1225
    %1228 = vrot.lane.b32.xlu0 %v1226, 64
    %v1229 = vpop.permute.xlu0 %1228
    %v1231 = vmul.f32 %v1210, %v1229
    %v1232 = vmul.f32 %v1212, 2.0
    %v1233 = vsub.f32 %v1232, 1.0
    %v1234 = vmul.f32 %v1212, %v1101
    %1236 = vrot.lane.b32.xlu0 %v1233, 64
    %v1237 = vpop.permute.xlu0 %1236
    %v1239 = vmul.f32 %v1212, %v1237
    %1241 = vrot.lane.b32.xlu0 %v1239, 32
    %v1242 = vpop.permute.xlu0 %1241
    %v1244 = vadd.f32 %v1234, %v1242
    %v1245 = vtanh.pop %v1244
    %1247 = vrot.lane.b32.xlu0 %v1245, 64
    %v1248 = vpop.permute.xlu0 %1247
    %v1250 = vmul.f32 %v1212, %v1248
    %1252 = vrot.lane.b32.xlu0 %v1231, 32
    %v1253 = vpop.permute.xlu0 %1252
    %1256 = vrot.lane.b32.xlu0 %v1250, 64
    %v1257 = vpop.permute.xlu0 %1256
    %v1259 = vsel %vm280, %v1253, %v1257
    %v1261 = vunpack.c.l.s4 1983009808
    %v1262 = vunpack.c.0.s8 %v1261
    %v1263 = vlaneseq
    %v1264 = vshrl.u32 %v1263, 7
    %v1265 = vsub.s32 %v1262, %v1264
    %v1266 = vrot.slane %v253, %v1265
    %v1267 = vcombine.high %v1266, %v1266
    %v1271 = vsel %vm290, %v1259, 0
    %1273 = vmatprep.subr.mxu0 0.0
    %1274 = vmatpush1.msra.mxu0 0.0
    %1275 = vmatprep.subr.mxu0 0.0
    %1276 = vmatpush1.msra.mxu0 0.0
    %1277 = vmatprep.subr.mxu0 0.0
    %1278 = vmatpush1.msra.mxu0 0.0
    %1279 = vmatprep.subr.mxu0 0.0
    %1280 = vmatpush1.msra.mxu0 0.0
    %1281 = vmatprep.subr.mxu0 0.0
    %1282 = vmatpush1.msra.mxu0 0.0
    %1283 = vmatprep.subr.mxu0 0.0
    %1284 = vmatpush1.msra.mxu0 0.0
    %1285 = vmatprep.subr.mxu0 0.0
    %1286 = vmatpush1.msra.mxu0 0.0
    %1287 = vmatprep.subr.mxu0 0.0
    %1288 = vmatpush1.msra.mxu0 0.0
    %1289 = vmatprep.subr.mxu0 %v269
    %1290 = vmatpush1.msra.mxu0 %v268
    %1291 = vmatprep.subr.mxu0 %v267
    %1292 = vmatpush1.msra.mxu0 %v266
    %1293 = vmatprep.subr.mxu0 %v265
    %1294 = vmatpush1.msra.mxu0 %v264
    %1295 = vmatprep.subr.mxu0 %v263
    %1296 = vmatpush1.msra.mxu0 %v262
    %1297 = vmatprep.subr.mxu0 %v261
    %1298 = vmatpush1.msra.mxu0 %v260
    %1299 = vmatprep.subr.mxu0 %v259
    %1300 = vmatpush1.msra.mxu0 %v258
    %1301 = vmatprep.subr.mxu0 %v257
    %1302 = vmatpush1.msra.mxu0 %v256
    %1303 = vmatprep.subr.mxu0 %v255
    %1304 = vmatpush1.msra.mxu0 %v254
    %1305 = vmatprep.subr.mxu0 0.0
    %1306 = vmatpush2.msra.mxu0 0.0
    %1307 = vmatprep.subr.mxu0 0.0
    %1308 = vmatpush2.msra.mxu0 0.0
    %1309 = vmatprep.subr.mxu0 0.0
    %1310 = vmatpush2.msra.mxu0 0.0
    %1311 = vmatprep.subr.mxu0 0.0
    %1312 = vmatpush2.msra.mxu0 0.0
    %1313 = vmatprep.subr.mxu0 0.0
    %1314 = vmatpush2.msra.mxu0 0.0
    %1315 = vmatprep.subr.mxu0 0.0
    %1316 = vmatpush2.msra.mxu0 0.0
    %1317 = vmatprep.subr.mxu0 0.0
    %1318 = vmatpush2.msra.mxu0 0.0
    %1319 = vmatprep.subr.mxu0 0.0
    %1320 = vmatpush2.msra.mxu0 0.0
    %1321 = vmatprep.subr.mxu0 0.0
    %1322 = vmatpush2.msra.mxu0 0.0
    %1323 = vmatprep.subr.mxu0 0.0
    %1324 = vmatpush2.msra.mxu0 0.0
    %1325 = vmatprep.subr.mxu0 0.0
    %1326 = vmatpush2.msra.mxu0 0.0
    %1327 = vmatprep.subr.mxu0 0.0
    %1328 = vmatpush2.msra.mxu0 0.0
    %1329 = vmatprep.subr.mxu0 0.0
    %1330 = vmatpush2.msra.mxu0 0.0
    %1331 = vmatprep.subr.mxu0 0.0
    %1332 = vmatpush2.msra.mxu0 0.0
    %1333 = vmatprep.subr.mxu0 0.0
    %1334 = vmatpush2.msra.mxu0 0.0
    %1335 = vmatprep.subr.mxu0 0.0
    %1336 = vmatpush2.msra.mxu0 0.0
    %1337 = vmatprep.mubr.f32.mxu0 0.0
    %1338 = vmatmul.mubr.f32.gmra.mxu0 %v1271
    %v1339 = vpop.f32.mrf.mxu0
    %v1340 = vadd.f32 %v1266, %v1339
    %v1341 = vpop.f32.mrf.mxu0
    %v1342 = vadd.f32 %v1267, %v1341
    %1343 = vdwg.mxu0
    %v1344 = vxor.u32 %v1340, 2147483648
    %v1345 = vxor.u32 %v1342, 2147483648
    %v1346 = vmul.f32 %v1344, 1.442695
    %v1347 = vpow.pop %v1346
    %v1348 = vmul.f32 %v1345, 1.442695
    %v1349 = vpow.pop %v1348
    %v1350 = vadd.f32 %v1347, 1.0
    %v1351 = vadd.f32 %v1349, 1.0
    %v1352 = vrcp.pop %v1350
    %v1353 = vmul.f32 1.0, %v1352
    %v1354 = vrcp.pop %v1351
    %v1355 = vmul.f32 1.0, %v1354
    %v1356 = vmul.f32 %v1353, 2.0
    %v1357 = vsub.f32 %v1356, 1.0
    %v1358 = vmul.f32 %v1353, %v1225
    %1360 = vrot.lane.b32.xlu0 %v1357, 64
    %v1361 = vpop.permute.xlu0 %1360
    %v1363 = vmul.f32 %v1353, %v1361
    %1365 = vrot.lane.b32.xlu0 %v1363, 32
    %v1366 = vpop.permute.xlu0 %1365
    %v1368 = vadd.f32 %v1358, %v1366
    %v1369 = vtanh.pop %v1368
    %1371 = vrot.lane.b32.xlu0 %v1369, 64
    %v1372 = vpop.permute.xlu0 %1371
    %v1374 = vmul.f32 %v1353, %v1372
    %v1375 = vmul.f32 %v1355, 2.0
    %v1376 = vsub.f32 %v1375, 1.0
    %v1377 = vmul.f32 %v1355, %v1244
    %1379 = vrot.lane.b32.xlu0 %v1376, 64
    %v1380 = vpop.permute.xlu0 %1379
    %v1382 = vmul.f32 %v1355, %v1380
    %1384 = vrot.lane.b32.xlu0 %v1382, 32
    %v1385 = vpop.permute.xlu0 %1384
    %v1387 = vadd.f32 %v1377, %v1385
    %v1388 = vtanh.pop %v1387
    %1390 = vrot.lane.b32.xlu0 %v1388, 64
    %v1391 = vpop.permute.xlu0 %1390
    %v1393 = vmul.f32 %v1355, %v1391
    %1395 = vrot.lane.b32.xlu0 %v1374, 32
    %v1396 = vpop.permute.xlu0 %1395
    %1399 = vrot.lane.b32.xlu0 %v1393, 64
    %v1400 = vpop.permute.xlu0 %1399
    %v1402 = vsel %vm280, %v1396, %v1400
    %v1404 = vsel %vm290, %v1402, 0
    %1406 = vmatprep.subr.mxu0 0.0
    %1407 = vmatpush1.msra.mxu0 0.0
    %1408 = vmatprep.subr.mxu0 0.0
    %1409 = vmatpush1.msra.mxu0 0.0
    %1410 = vmatprep.subr.mxu0 0.0
    %1411 = vmatpush1.msra.mxu0 0.0
    %1412 = vmatprep.subr.mxu0 0.0
    %1413 = vmatpush1.msra.mxu0 0.0
    %1414 = vmatprep.subr.mxu0 0.0
    %1415 = vmatpush1.msra.mxu0 0.0
    %1416 = vmatprep.subr.mxu0 0.0
    %1417 = vmatpush1.msra.mxu0 0.0
    %1418 = vmatprep.subr.mxu0 0.0
    %1419 = vmatpush1.msra.mxu0 0.0
    %1420 = vmatprep.subr.mxu0 0.0
    %1421 = vmatpush1.msra.mxu0 0.0
    %1422 = vmatprep.subr.mxu0 %v269
    %1423 = vmatpush1.msra.mxu0 %v268
    %1424 = vmatprep.subr.mxu0 %v267
    %1425 = vmatpush1.msra.mxu0 %v266
    %1426 = vmatprep.subr.mxu0 %v265
    %1427 = vmatpush1.msra.mxu0 %v264
    %1428 = vmatprep.subr.mxu0 %v263
    %1429 = vmatpush1.msra.mxu0 %v262
    %1430 = vmatprep.subr.mxu0 %v261
    %1431 = vmatpush1.msra.mxu0 %v260
    %1432 = vmatprep.subr.mxu0 %v259
    %1433 = vmatpush1.msra.mxu0 %v258
    %1434 = vmatprep.subr.mxu0 %v257
    %1435 = vmatpush1.msra.mxu0 %v256
    %1436 = vmatprep.subr.mxu0 %v255
    %1437 = vmatpush1.msra.mxu0 %v254
    %1438 = vmatprep.subr.mxu0 0.0
    %1439 = vmatpush2.msra.mxu0 0.0
    %1440 = vmatprep.subr.mxu0 0.0
    %1441 = vmatpush2.msra.mxu0 0.0
    %1442 = vmatprep.subr.mxu0 0.0
    %1443 = vmatpush2.msra.mxu0 0.0
    %1444 = vmatprep.subr.mxu0 0.0
    %1445 = vmatpush2.msra.mxu0 0.0
    %1446 = vmatprep.subr.mxu0 0.0
    %1447 = vmatpush2.msra.mxu0 0.0
    %1448 = vmatprep.subr.mxu0 0.0
    %1449 = vmatpush2.msra.mxu0 0.0
    %1450 = vmatprep.subr.mxu0 0.0
    %1451 = vmatpush2.msra.mxu0 0.0
    %1452 = vmatprep.subr.mxu0 0.0
    %1453 = vmatpush2.msra.mxu0 0.0
    %1454 = vmatprep.subr.mxu0 0.0
    %1455 = vmatpush2.msra.mxu0 0.0
    %1456 = vmatprep.subr.mxu0 0.0
    %1457 = vmatpush2.msra.mxu0 0.0
    %1458 = vmatprep.subr.mxu0 0.0
    %1459 = vmatpush2.msra.mxu0 0.0
    %1460 = vmatprep.subr.mxu0 0.0
    %1461 = vmatpush2.msra.mxu0 0.0
    %1462 = vmatprep.subr.mxu0 0.0
    %1463 = vmatpush2.msra.mxu0 0.0
    %1464 = vmatprep.subr.mxu0 0.0
    %1465 = vmatpush2.msra.mxu0 0.0
    %1466 = vmatprep.subr.mxu0 0.0
    %1467 = vmatpush2.msra.mxu0 0.0
    %1468 = vmatprep.subr.mxu0 0.0
    %1469 = vmatpush2.msra.mxu0 0.0
    %1470 = vmatprep.mubr.f32.mxu0 0.0
    %1471 = vmatmul.mubr.f32.gmra.mxu0 %v1404
    %v1472 = vpop.f32.mrf.mxu0
    %v1473 = vpop.f32.mrf.mxu0
    %v1474 = vadd.f32 %v1267, %v1473
    %1475 = vdwg.mxu0
    %v1476 = vxor.u32 %v1474, 2147483648
    %v1477 = vmul.f32 %v1476, 1.442695
    %v1478 = vpow.pop %v1477
    %v1479 = vadd.f32 %v1478, 1.0
    %v1480 = vrcp.pop %v1479
    %v1481 = vmul.f32 1.0, %v1480
    %v1482 = vmul.f32 %v1481, 2.0
    %v1483 = vsub.f32 %v1482, 1.0
    %v1484 = vmul.f32 %v1481, %v1387
    %1486 = vrot.lane.b32.xlu0 %v1483, 64
    %v1487 = vpop.permute.xlu0 %1486
    %v1489 = vmul.f32 %v1481, %v1487
    %1491 = vrot.lane.b32.xlu0 %v1489, 32
    %v1492 = vpop.permute.xlu0 %1491
    %v1494 = vadd.f32 %v1484, %v1492
    %v1495 = vtanh.pop %v1494
    %1497 = vrot.lane.b32.xlu0 %v1495, 64
    %v1498 = vpop.permute.xlu0 %1497
    %v1500 = vmul.f32 %v1481, %v1498
    %v1501 = vld [vmem:[#allocation11] sm:$0xff]
    %v1502 = vld [vmem:[#allocation11 + $0x8] sm:$0xff]
    %v1503 = vld [vmem:[#allocation11 + $0x10] sm:$0xff]
    %v1504 = vld [vmem:[#allocation11 + $0x18] sm:$0xff]
    %v1505 = vld [vmem:[%s7] sm:$0x1]
    %v1507 = vlaneseq
    %v1508 = vshrl.u32 %v1507, 7
    %v1509 = vsub.s32 0, %v1508
    %v1510 = vrot.slane %v1505, %v1509
    %1513 = vrot.lane.b32.xlu0 %v1500, 32
    %v1514 = vpop.permute.xlu0 %1513
    %v1515 = vsel %vm280, %v1514, 0
    %1517 = vmatprep.subr.mxu0 0.0
    %1518 = vmatpush1.msra.mxu0 0.0
    %1519 = vmatprep.subr.mxu0 0.0
    %1520 = vmatpush1.msra.mxu0 0.0
    %1521 = vmatprep.subr.mxu0 0.0
    %1522 = vmatpush1.msra.mxu0 0.0
    %1523 = vmatprep.subr.mxu0 0.0
    %1524 = vmatpush1.msra.mxu0 0.0
    %1525 = vmatprep.subr.mxu0 0.0
    %1526 = vmatpush1.msra.mxu0 0.0
    %1527 = vmatprep.subr.mxu0 0.0
    %1528 = vmatpush1.msra.mxu0 0.0
    %1529 = vmatprep.subr.mxu0 0.0
    %1530 = vmatpush1.msra.mxu0 0.0
    %1531 = vmatprep.subr.mxu0 0.0
    %1532 = vmatpush1.msra.mxu0 0.0
    %1533 = vmatprep.subr.mxu0 0.0
    %1534 = vmatpush1.msra.mxu0 0.0
    %1535 = vmatprep.subr.mxu0 0.0
    %1536 = vmatpush1.msra.mxu0 0.0
    %1537 = vmatprep.subr.mxu0 0.0
    %1538 = vmatpush1.msra.mxu0 0.0
    %1539 = vmatprep.subr.mxu0 0.0
    %1540 = vmatpush1.msra.mxu0 0.0
    %1541 = vmatprep.subr.mxu0 0.0
    %1542 = vmatpush1.msra.mxu0 %v1504
    %1543 = vmatprep.subr.mxu0 0.0
    %1544 = vmatpush1.msra.mxu0 %v1503
    %1545 = vmatprep.subr.mxu0 0.0
    %1546 = vmatpush1.msra.mxu0 %v1502
    %1547 = vmatprep.subr.mxu0 0.0
    %1548 = vmatpush1.msra.mxu0 %v1501
    %1549 = vmatprep.subr.mxu0 0.0
    %1550 = vmatpush2.msra.mxu0 0.0
    %1551 = vmatprep.subr.mxu0 0.0
    %1552 = vmatpush2.msra.mxu0 0.0
    %1553 = vmatprep.subr.mxu0 0.0
    %1554 = vmatpush2.msra.mxu0 0.0
    %1555 = vmatprep.subr.mxu0 0.0
    %1556 = vmatpush2.msra.mxu0 0.0
    %1557 = vmatprep.subr.mxu0 0.0
    %1558 = vmatpush2.msra.mxu0 0.0
    %1559 = vmatprep.subr.mxu0 0.0
    %1560 = vmatpush2.msra.mxu0 0.0
    %1561 = vmatprep.subr.mxu0 0.0
    %1562 = vmatpush2.msra.mxu0 0.0
    %1563 = vmatprep.subr.mxu0 0.0
    %1564 = vmatpush2.msra.mxu0 0.0
    %1565 = vmatprep.subr.mxu0 0.0
    %1566 = vmatpush2.msra.mxu0 0.0
    %1567 = vmatprep.subr.mxu0 0.0
    %1568 = vmatpush2.msra.mxu0 0.0
    %1569 = vmatprep.subr.mxu0 0.0
    %1570 = vmatpush2.msra.mxu0 0.0
    %1571 = vmatprep.subr.mxu0 0.0
    %1572 = vmatpush2.msra.mxu0 0.0
    %1573 = vmatprep.subr.mxu0 0.0
    %1574 = vmatpush2.msra.mxu0 0.0
    %1575 = vmatprep.subr.mxu0 0.0
    %1576 = vmatpush2.msra.mxu0 0.0
    %1577 = vmatprep.subr.mxu0 0.0
    %1578 = vmatpush2.msra.mxu0 0.0
    %1579 = vmatprep.subr.mxu0 0.0
    %1580 = vmatpush2.msra.mxu0 0.0
    %1581 = vmatprep.mubr.f32.mxu0 0.0
    %1582 = vmatmul.mubr.f32.gmra.mxu0 %v1515
    %v1583 = vpop.f32.mrf.mxu0
    %v1584 = vadd.f32 %v1510, %v1583
    %v1585 = vpop.f32.mrf.mxu0
    %1586 = vdwg.mxu0
    %v1587 = vrot.slane %v1500, 6
    %v1590 = vrot.slane %v1368, 4
    %1591 = vrot.lane.b32.xlu0 %v1590, 64
    %v1592 = vpop.permute.xlu0 %1591
    %v1595 = vrot.slane %v1494, 2
    %1596 = vrot.lane.b32.xlu0 %v1595, 64
    %v1597 = vpop.permute.xlu0 %1596
    %1600 = vrot.lane.b32.xlu0 %v1584, 96
    %v1601 = vpop.permute.xlu0 %1600
    %vm1602 = vcmask 1041408
    %v1603 = vsel %vm1602, %v1374, %v1587
    %vm1604 = vcmask 1043456
    %v1605 = vsel %vm1604, %v1603, %v1592
    %vm1606 = vcmask 1045504
    %v1607 = vsel %vm1606, %v1605, %v1597
    %1609 = vrot.lane.b32.xlu0 %v1607, 32
    %v1610 = vpop.permute.xlu0 %1609
    %1611 = vrot.lane.b32.xlu0 %v1601, 32
    %v1612 = vpop.permute.xlu0 %1611
    %1615 = vst.msk [vmem:[#allocation13] sm:$0xff] %vm280, %v1610
    %vm1616 = vcmask 254976
    %1617 = vst.msk [vmem:[#allocation13 + $0x8] sm:$0x3] %vm1616, %v1612
    // Predicated region
    $region58: #{tpu_custom_call.1} parent=1 // pred_check
      _
    $region59: #{tpu_custom_call.1} parent=1 // pred_check_branch
      %1619 = sbr.rel (0) target = $region61
    $region60: #{tpu_custom_call.1} parent=1 // pred_region
      %s1621 = ssub.s32 256, 256
      %1622 = vsyncadd [#allocation4], %s1621
      %s1623 = sshll.u32 [#allocation13], 4
      %s1624 = int_to_ptr.vmem [resolvable:$true] %s1623
      %1629 = dma.vmem_to_hbm [thread:$0]  %s1624, 256, %s8, [#allocation4], 128, 128, 8
    $region61: #{tpu_custom_call.1} parent=1 // pred_fallthru
      _
    // Predicated region
    $region62: #{tpu_custom_call.1} parent=1 // pred_check
      _
    $region63: #{tpu_custom_call.1} parent=1 // pred_check_branch
      %1631 = sbr.rel (0) target = $region65
    $region64: #{tpu_custom_call.1} parent=1 // pred_region
      %1632 = dma.done [#allocation4], 256
    $region65: #{tpu_custom_call.1} parent=1 // pred_fallthru
      _
    %1633 = vsyncpa [#allocation3], 1
    %1634 = vsyncpa [#allocation6], 1
    %1635 = vsyncpa [#allocation9], 1
    %1636 = vsyncpa [#allocation12], 1
    %1637 = vsyncpa [#allocation4], 1

</llo_original>
